<compile_context>
chip_gen: v5e
topology: v5e:2x2
jax: 0.10.0
libtpu: 0.0.40
codegen_flags: <defaults>
</compile_context>

<pallas_src>
import functools

import jax
import jax.numpy as jnp
from jax import lax
from jax.experimental import pallas as pl
from jax.experimental.pallas import tpu as pltpu


# ----------------------------------------------------------------------------
# Fused LSTM stack + head kernel
# ----------------------------------------------------------------------------
def _fused_lstm_net_kernel(*refs, num_layers, hidden, seq_len, batch):
    # refs layout:
    #   refs[0]                       x_ref      (T*B, I)   time-major flattened
    #   refs[1 : 1+3L]                per layer: wih (F,4H), whh (H,4H), b (1,4H)
    #   refs[1+3L : 5+3L]             wd (H,128), bd (1,128), wf (128,Opad), bf (1,Opad)
    #   refs[5+3L]                    out_ref    (T*B, Opad)
    #   refs[6+3L]                    hseq_sc    (T*B, H) VMEM scratch
    x_ref = refs[0]
    lw = refs[1:1 + 3 * num_layers]
    wd_ref, bd_ref, wf_ref, bf_ref = refs[1 + 3 * num_layers:5 + 3 * num_layers]
    out_ref = refs[5 + 3 * num_layers]
    hseq_sc = refs[6 + 3 * num_layers]

    T, B, H = seq_len, batch, hidden

    inp = x_ref[...]                                   # (T*B, I), row = t*B + b
    for layer in range(num_layers):
        wih = lw[3 * layer][...]                       # (F, 4H)
        whh = lw[3 * layer + 1][...]                   # (H, 4H)
        b = lw[3 * layer + 2][...]                     # (1, 4H) = b_ih + b_hh

        # Hoisted input projection + bias for ALL time steps in one MXU pass.
        gx = jnp.dot(inp, wih,
                     preferred_element_type=jnp.float32) + b   # (T*B, 4H)

        h = jnp.zeros((B, H), jnp.float32)             # init_hidden(): zeros
        c = jnp.zeros((B, H), jnp.float32)

        # Serial recurrence; T is static -> fully unrolled for the scheduler.
        for t in range(T):
            gates = gx[t * B:(t + 1) * B, :] + jnp.dot(
                h, whh, preferred_element_type=jnp.float32)    # (B, 4H)
            i_g = jax.nn.sigmoid(gates[:, 0 * H:1 * H])
            f_g = jax.nn.sigmoid(gates[:, 1 * H:2 * H])
            g_g = jnp.tanh(gates[:, 2 * H:3 * H])
            o_g = jax.nn.sigmoid(gates[:, 3 * H:4 * H])
            c = f_g * c + i_g * g_g
            h = o_g * jnp.tanh(c)
            hseq_sc[pl.ds(t * B, B), :] = h            # stash step output

        inp = hseq_sc[...]                             # (T*B, H) feeds next layer

    # Head: relu(dense(.)) -> fc(.)   (fc output pre-padded to lane-dense width)
    z = jnp.maximum(
        jnp.dot(inp, wd_ref[...],
                preferred_element_type=jnp.float32) + bd_ref[...], 0.0)
    out_ref[...] = jnp.dot(z, wf_ref[...],
                           preferred_element_type=jnp.float32) + bf_ref[...]


# ----------------------------------------------------------------------------
# Full forward (single pallas_call)
# ----------------------------------------------------------------------------
@functools.partial(jax.jit, static_argnames=("hidden_size",))
def lstm_net_forward(x, params, hidden_size):
    """x: (B, T, InLstmSize) float32 -> (B, T, OutputSize) float32."""
    B, T, _ = x.shape
    H = hidden_size
    out_size = params["wf"].shape[1]
    o_pad = ((out_size + 127) // 128) * 128

    # Pad fc weights/bias with zeros so the kernel's output store is lane-dense.
    wf_p = jnp.zeros((params["wf"].shape[0], o_pad),
                     jnp.float32).at[:, :out_size].set(params["wf"])
    bf_p = jnp.zeros((1, o_pad), jnp.float32).at[:, :out_size].set(params["bf"])

    # Time-major flatten (row = t*B + b); tiny XLA op, keeps the kernel 2D.
    x_flat = jnp.transpose(x, (1, 0, 2)).reshape(T * B, -1)

    num_layers = len(params["lstm_layers"])
    layer_args = []
    for (wih, whh, b) in params["lstm_layers"]:
        layer_args += [wih, whh, b]

    kern = functools.partial(_fused_lstm_net_kernel, num_layers=num_layers,
                             hidden=H, seq_len=T, batch=B)
    n_in = 1 + 3 * num_layers + 4

    out = pl.pallas_call(
        kern,
        out_shape=jax.ShapeDtypeStruct((T * B, o_pad), jnp.float32),
        in_specs=[pl.BlockSpec(memory_space=pltpu.MemorySpace.VMEM)] * n_in,
        out_specs=pl.BlockSpec(memory_space=pltpu.MemorySpace.VMEM),
        scratch_shapes=[pltpu.VMEM((T * B, H), jnp.float32)],
    )(x_flat, *layer_args, params["wd"], params["bd"], wf_p, bf_p)

    out = out.reshape(T, B, o_pad)[:, :, :out_size]    # drop lane padding
    return jnp.transpose(out, (1, 0, 2))               # back to (B, T, O)


# ----------------------------------------------------------------------------
# Pure-JAX reference (for correctness check of the kernel)
# ----------------------------------------------------------------------------
def lstm_net_reference(x, params, hidden_size):
    B, T, _ = x.shape
    h_seq = jnp.transpose(x, (1, 0, 2))
    for (wih, whh, b) in params["lstm_layers"]:
        def step(carry, x_t):
            h, c = carry
            gates = x_t @ wih + h @ whh + b[0]
            i, f, g, o = jnp.split(gates, 4, axis=-1)
            i, f, o = jax.nn.sigmoid(i), jax.nn.sigmoid(f), jax.nn.sigmoid(o)
            g = jnp.tanh(g)
            c = f * c + i * g
            h = o * jnp.tanh(c)
            return (h, c), h
        init = (jnp.zeros((B, hidden_size), jnp.float32),
                jnp.zeros((B, hidden_size), jnp.float32))
        _, h_seq = lax.scan(step, init, h_seq)
    h = jnp.transpose(h_seq, (1, 0, 2))
    z = jnp.maximum(h @ params["wd"] + params["bd"][0], 0.0)
    return z @ params["wf"] + params["bf"][0]


# ----------------------------------------------------------------------------
# Deterministic parameter init (synthetic, PyTorch-style uniform)
# ----------------------------------------------------------------------------
def init_params(key, in_size, hidden_size, layer_size, output_size):
    def uniform(k, shape, bound):
        return jax.random.uniform(k, shape, jnp.float32, -bound, bound)

    params = {"lstm_layers": []}
    bound = 1.0 / jnp.sqrt(hidden_size).astype(jnp.float32)
    for layer in range(layer_size):
        isz = in_size if layer == 0 else hidden_size
        key, k1, k2, k3, k4 = jax.random.split(key, 5)
        wih = uniform(k1, (isz, 4 * hidden_size), bound)
        whh = uniform(k2, (hidden_size, 4 * hidden_size), bound)
        b = (uniform(k3, (1, 4 * hidden_size), bound)
             + uniform(k4, (1, 4 * hidden_size), bound))   # b_ih + b_hh
        params["lstm_layers"].append((wih, whh, b))

    key, k1, k2, k3, k4 = jax.random.split(key, 5)
    bd_bound = 1.0 / jnp.sqrt(hidden_size).astype(jnp.float32)
    bf_bound = 1.0 / jnp.sqrt(128.0).astype(jnp.float32)
    params["wd"] = uniform(k1, (hidden_size, 128), bd_bound)
    params["bd"] = uniform(k2, (1, 128), bd_bound)
    params["wf"] = uniform(k3, (128, output_size), bf_bound)
    params["bf"] = uniform(k4, (1, output_size), bf_bound)
    return params


if __name__ == "__main__":
    # Small shapes consistent with the module's forward.
    BATCH = 2
    SEQ = 8
    IN_LSTM = 16      # np.InLstmSize
    HIDDEN = 32       # np.HiddenSize
    LAYERS = 2        # np.LayerSize
    OUT = 4           # np.OutputSize

    key = jax.random.PRNGKey(0)
    key, kx, kp = jax.random.split(key, 3)
    x = jax.random.normal(kx, (BATCH, SEQ, IN_LSTM), jnp.float32)
    params = init_params(kp, IN_LSTM, HIDDEN, LAYERS, OUT)

    out = lstm_net_forward(x, params, HIDDEN)
    out = jax.block_until_ready(out)

    ref = jax.block_until_ready(lstm_net_reference(x, params, HIDDEN))
    assert out.shape == (BATCH, SEQ, OUT)
    assert jnp.allclose(out, ref, atol=1e-4, rtol=1e-4)

    print("KERNEL_OK")
</pallas_src>

<mosaic_0001>
module attributes {stable_mosaic.version = 11 : i64} {
  func.func @_fused_lstm_net_kernel(%arg0: memref<16x16xf32, #tpu.memory_space<vmem>>, %arg1: memref<16x128xf32, #tpu.memory_space<vmem>>, %arg2: memref<32x128xf32, #tpu.memory_space<vmem>>, %arg3: memref<1x128xf32, #tpu.memory_space<vmem>>, %arg4: memref<32x128xf32, #tpu.memory_space<vmem>>, %arg5: memref<32x128xf32, #tpu.memory_space<vmem>>, %arg6: memref<1x128xf32, #tpu.memory_space<vmem>>, %arg7: memref<32x128xf32, #tpu.memory_space<vmem>>, %arg8: memref<1x128xf32, #tpu.memory_space<vmem>>, %arg9: memref<128x128xf32, #tpu.memory_space<vmem>>, %arg10: memref<1x128xf32, #tpu.memory_space<vmem>>, %arg11: memref<16x128xf32, #tpu.memory_space<vmem>>, %arg12: memref<16x32xf32, #tpu.memory_space<vmem>>) attributes {dimension_semantics = [], scalar_prefetch = 0 : i64, scratch_operands = 1 : i64, tpu.core_type = #tpu.core_type<tc>} {
    %c0 = arith.constant 0 : index
    %c0_0 = arith.constant 0 : index
    %0 = vector.load %arg0[%c0, %c0_0] : memref<16x16xf32, #tpu.memory_space<vmem>>, vector<16x16xf32>
    %c0_1 = arith.constant 0 : index
    %c0_2 = arith.constant 0 : index
    %1 = vector.load %arg1[%c0_1, %c0_2] : memref<16x128xf32, #tpu.memory_space<vmem>>, vector<16x128xf32>
    %c0_3 = arith.constant 0 : index
    %c0_4 = arith.constant 0 : index
    %2 = vector.load %arg2[%c0_3, %c0_4] : memref<32x128xf32, #tpu.memory_space<vmem>>, vector<32x128xf32>
    %c0_5 = arith.constant 0 : index
    %c0_6 = arith.constant 0 : index
    %3 = vector.load %arg3[%c0_5, %c0_6] : memref<1x128xf32, #tpu.memory_space<vmem>>, vector<1x128xf32>
    %cst = arith.constant dense<0.000000e+00> : vector<16x128xf32>
    %4 = tpu.matmul %0, %1, %cst {dimension_numbers = #tpu.dot_dimension_numbers<[1], [0], [0], [1], [0, 0, 1, 1], [], []>} : vector<16x16xf32>, vector<16x128xf32>, vector<16x128xf32> -> vector<16x128xf32>
    %5 = vector.broadcast %3 : vector<1x128xf32> to vector<16x128xf32>
    %6 = arith.addf %4, %5 : vector<16x128xf32>
    %cst_7 = arith.constant 0.000000e+00 : f32
    %7 = vector.broadcast %cst_7 : f32 to vector<2x32xf32>
    %cst_8 = arith.constant 0.000000e+00 : f32
    %8 = vector.broadcast %cst_8 : f32 to vector<2x32xf32>
    %9 = vector.extract_strided_slice %6 {offsets = [0, 0], sizes = [2, 128], strides = [1, 1]} : vector<16x128xf32> to vector<2x128xf32>
    %cst_9 = arith.constant dense<0.000000e+00> : vector<2x128xf32>
    %10 = tpu.matmul %7, %2, %cst_9 {dimension_numbers = #tpu.dot_dimension_numbers<[1], [0], [0], [1], [0, 0, 1, 1], [], []>} : vector<2x32xf32>, vector<32x128xf32>, vector<2x128xf32> -> vector<2x128xf32>
    %11 = arith.addf %9, %10 : vector<2x128xf32>
    %12 = vector.extract_strided_slice %11 {offsets = [0, 0], sizes = [2, 32], strides = [1, 1]} : vector<2x128xf32> to vector<2x32xf32>
    %13 = arith.negf %12 : vector<2x32xf32>
    %14 = math.exp %13 : vector<2x32xf32>
    %cst_10 = arith.constant 1.000000e+00 : f32
    %15 = vector.broadcast %cst_10 : f32 to vector<2x32xf32>
    %16 = arith.addf %15, %14 : vector<2x32xf32>
    %17 = arith.divf %15, %16 : vector<2x32xf32>
    %18 = vector.extract_strided_slice %11 {offsets = [0, 32], sizes = [2, 32], strides = [1, 1]} : vector<2x128xf32> to vector<2x32xf32>
    %19 = arith.negf %18 : vector<2x32xf32>
    %20 = math.exp %19 : vector<2x32xf32>
    %cst_11 = arith.constant 1.000000e+00 : f32
    %21 = vector.broadcast %cst_11 : f32 to vector<2x32xf32>
    %22 = arith.addf %21, %20 : vector<2x32xf32>
    %23 = arith.divf %21, %22 : vector<2x32xf32>
    %24 = vector.extract_strided_slice %11 {offsets = [0, 64], sizes = [2, 32], strides = [1, 1]} : vector<2x128xf32> to vector<2x32xf32>
    %25 = math.tanh %24 : vector<2x32xf32>
    %26 = vector.extract_strided_slice %11 {offsets = [0, 96], sizes = [2, 32], strides = [1, 1]} : vector<2x128xf32> to vector<2x32xf32>
    %27 = arith.negf %26 : vector<2x32xf32>
    %28 = math.exp %27 : vector<2x32xf32>
    %cst_12 = arith.constant 1.000000e+00 : f32
    %29 = vector.broadcast %cst_12 : f32 to vector<2x32xf32>
    %30 = arith.addf %29, %28 : vector<2x32xf32>
    %31 = arith.divf %29, %30 : vector<2x32xf32>
    %32 = arith.mulf %23, %8 : vector<2x32xf32>
    %33 = arith.mulf %17, %25 : vector<2x32xf32>
    %34 = arith.addf %32, %33 : vector<2x32xf32>
    %35 = math.tanh %34 : vector<2x32xf32>
    %36 = arith.mulf %31, %35 : vector<2x32xf32>
    %c0_13 = arith.constant 0 : index
    %c0_14 = arith.constant 0 : index
    %37 = vector.load %arg12[%c0_13, %c0_14] : memref<16x32xf32, #tpu.memory_space<vmem>>, vector<2x32xf32>
    tpu.vector_store %arg12[%c0_13, %c0_14], %36 {strides = array<i32>} : memref<16x32xf32, #tpu.memory_space<vmem>>, vector<2x32xf32>,
    %38 = vector.extract_strided_slice %6 {offsets = [2, 0], sizes = [2, 128], strides = [1, 1]} : vector<16x128xf32> to vector<2x128xf32>
    %cst_15 = arith.constant dense<0.000000e+00> : vector<2x128xf32>
    %39 = tpu.matmul %36, %2, %cst_15 {dimension_numbers = #tpu.dot_dimension_numbers<[1], [0], [0], [1], [0, 0, 1, 1], [], []>} : vector<2x32xf32>, vector<32x128xf32>, vector<2x128xf32> -> vector<2x128xf32>
    %40 = arith.addf %38, %39 : vector<2x128xf32>
    %41 = vector.extract_strided_slice %40 {offsets = [0, 0], sizes = [2, 32], strides = [1, 1]} : vector<2x128xf32> to vector<2x32xf32>
    %42 = arith.negf %41 : vector<2x32xf32>
    %43 = math.exp %42 : vector<2x32xf32>
    %cst_16 = arith.constant 1.000000e+00 : f32
    %44 = vector.broadcast %cst_16 : f32 to vector<2x32xf32>
    %45 = arith.addf %44, %43 : vector<2x32xf32>
    %46 = arith.divf %44, %45 : vector<2x32xf32>
    %47 = vector.extract_strided_slice %40 {offsets = [0, 32], sizes = [2, 32], strides = [1, 1]} : vector<2x128xf32> to vector<2x32xf32>
    %48 = arith.negf %47 : vector<2x32xf32>
    %49 = math.exp %48 : vector<2x32xf32>
    %cst_17 = arith.constant 1.000000e+00 : f32
    %50 = vector.broadcast %cst_17 : f32 to vector<2x32xf32>
    %51 = arith.addf %50, %49 : vector<2x32xf32>
    %52 = arith.divf %50, %51 : vector<2x32xf32>
    %53 = vector.extract_strided_slice %40 {offsets = [0, 64], sizes = [2, 32], strides = [1, 1]} : vector<2x128xf32> to vector<2x32xf32>
    %54 = math.tanh %53 : vector<2x32xf32>
    %55 = vector.extract_strided_slice %40 {offsets = [0, 96], sizes = [2, 32], strides = [1, 1]} : vector<2x128xf32> to vector<2x32xf32>
    %56 = arith.negf %55 : vector<2x32xf32>
    %57 = math.exp %56 : vector<2x32xf32>
    %cst_18 = arith.constant 1.000000e+00 : f32
    %58 = vector.broadcast %cst_18 : f32 to vector<2x32xf32>
    %59 = arith.addf %58, %57 : vector<2x32xf32>
    %60 = arith.divf %58, %59 : vector<2x32xf32>
    %61 = arith.mulf %52, %34 : vector<2x32xf32>
    %62 = arith.mulf %46, %54 : vector<2x32xf32>
    %63 = arith.addf %61, %62 : vector<2x32xf32>
    %64 = math.tanh %63 : vector<2x32xf32>
    %65 = arith.mulf %60, %64 : vector<2x32xf32>
    %c2 = arith.constant 2 : index
    %c0_19 = arith.constant 0 : index
    %66 = vector.load %arg12[%c2, %c0_19] : memref<16x32xf32, #tpu.memory_space<vmem>>, vector<2x32xf32>
    tpu.vector_store %arg12[%c2, %c0_19], %65 {strides = array<i32>} : memref<16x32xf32, #tpu.memory_space<vmem>>, vector<2x32xf32>,
    %67 = vector.extract_strided_slice %6 {offsets = [4, 0], sizes = [2, 128], strides = [1, 1]} : vector<16x128xf32> to vector<2x128xf32>
    %cst_20 = arith.constant dense<0.000000e+00> : vector<2x128xf32>
    %68 = tpu.matmul %65, %2, %cst_20 {dimension_numbers = #tpu.dot_dimension_numbers<[1], [0], [0], [1], [0, 0, 1, 1], [], []>} : vector<2x32xf32>, vector<32x128xf32>, vector<2x128xf32> -> vector<2x128xf32>
    %69 = arith.addf %67, %68 : vector<2x128xf32>
    %70 = vector.extract_strided_slice %69 {offsets = [0, 0], sizes = [2, 32], strides = [1, 1]} : vector<2x128xf32> to vector<2x32xf32>
    %71 = arith.negf %70 : vector<2x32xf32>
    %72 = math.exp %71 : vector<2x32xf32>
    %cst_21 = arith.constant 1.000000e+00 : f32
    %73 = vector.broadcast %cst_21 : f32 to vector<2x32xf32>
    %74 = arith.addf %73, %72 : vector<2x32xf32>
    %75 = arith.divf %73, %74 : vector<2x32xf32>
    %76 = vector.extract_strided_slice %69 {offsets = [0, 32], sizes = [2, 32], strides = [1, 1]} : vector<2x128xf32> to vector<2x32xf32>
    %77 = arith.negf %76 : vector<2x32xf32>
    %78 = math.exp %77 : vector<2x32xf32>
    %cst_22 = arith.constant 1.000000e+00 : f32
    %79 = vector.broadcast %cst_22 : f32 to vector<2x32xf32>
    %80 = arith.addf %79, %78 : vector<2x32xf32>
    %81 = arith.divf %79, %80 : vector<2x32xf32>
    %82 = vector.extract_strided_slice %69 {offsets = [0, 64], sizes = [2, 32], strides = [1, 1]} : vector<2x128xf32> to vector<2x32xf32>
    %83 = math.tanh %82 : vector<2x32xf32>
    %84 = vector.extract_strided_slice %69 {offsets = [0, 96], sizes = [2, 32], strides = [1, 1]} : vector<2x128xf32> to vector<2x32xf32>
    %85 = arith.negf %84 : vector<2x32xf32>
    %86 = math.exp %85 : vector<2x32xf32>
    %cst_23 = arith.constant 1.000000e+00 : f32
    %87 = vector.broadcast %cst_23 : f32 to vector<2x32xf32>
    %88 = arith.addf %87, %86 : vector<2x32xf32>
    %89 = arith.divf %87, %88 : vector<2x32xf32>
    %90 = arith.mulf %81, %63 : vector<2x32xf32>
    %91 = arith.mulf %75, %83 : vector<2x32xf32>
    %92 = arith.addf %90, %91 : vector<2x32xf32>
    %93 = math.tanh %92 : vector<2x32xf32>
    %94 = arith.mulf %89, %93 : vector<2x32xf32>
    %c4 = arith.constant 4 : index
    %c0_24 = arith.constant 0 : index
    %95 = vector.load %arg12[%c4, %c0_24] : memref<16x32xf32, #tpu.memory_space<vmem>>, vector<2x32xf32>
    tpu.vector_store %arg12[%c4, %c0_24], %94 {strides = array<i32>} : memref<16x32xf32, #tpu.memory_space<vmem>>, vector<2x32xf32>,
    %96 = vector.extract_strided_slice %6 {offsets = [6, 0], sizes = [2, 128], strides = [1, 1]} : vector<16x128xf32> to vector<2x128xf32>
    %cst_25 = arith.constant dense<0.000000e+00> : vector<2x128xf32>
    %97 = tpu.matmul %94, %2, %cst_25 {dimension_numbers = #tpu.dot_dimension_numbers<[1], [0], [0], [1], [0, 0, 1, 1], [], []>} : vector<2x32xf32>, vector<32x128xf32>, vector<2x128xf32> -> vector<2x128xf32>
    %98 = arith.addf %96, %97 : vector<2x128xf32>
    %99 = vector.extract_strided_slice %98 {offsets = [0, 0], sizes = [2, 32], strides = [1, 1]} : vector<2x128xf32> to vector<2x32xf32>
    %100 = arith.negf %99 : vector<2x32xf32>
    %101 = math.exp %100 : vector<2x32xf32>
    %cst_26 = arith.constant 1.000000e+00 : f32
    %102 = vector.broadcast %cst_26 : f32 to vector<2x32xf32>
    %103 = arith.addf %102, %101 : vector<2x32xf32>
    %104 = arith.divf %102, %103 : vector<2x32xf32>
    %105 = vector.extract_strided_slice %98 {offsets = [0, 32], sizes = [2, 32], strides = [1, 1]} : vector<2x128xf32> to vector<2x32xf32>
    %106 = arith.negf %105 : vector<2x32xf32>
    %107 = math.exp %106 : vector<2x32xf32>
    %cst_27 = arith.constant 1.000000e+00 : f32
    %108 = vector.broadcast %cst_27 : f32 to vector<2x32xf32>
    %109 = arith.addf %108, %107 : vector<2x32xf32>
    %110 = arith.divf %108, %109 : vector<2x32xf32>
    %111 = vector.extract_strided_slice %98 {offsets = [0, 64], sizes = [2, 32], strides = [1, 1]} : vector<2x128xf32> to vector<2x32xf32>
    %112 = math.tanh %111 : vector<2x32xf32>
    %113 = vector.extract_strided_slice %98 {offsets = [0, 96], sizes = [2, 32], strides = [1, 1]} : vector<2x128xf32> to vector<2x32xf32>
    %114 = arith.negf %113 : vector<2x32xf32>
    %115 = math.exp %114 : vector<2x32xf32>
    %cst_28 = arith.constant 1.000000e+00 : f32
    %116 = vector.broadcast %cst_28 : f32 to vector<2x32xf32>
    %117 = arith.addf %116, %115 : vector<2x32xf32>
    %118 = arith.divf %116, %117 : vector<2x32xf32>
    %119 = arith.mulf %110, %92 : vector<2x32xf32>
    %120 = arith.mulf %104, %112 : vector<2x32xf32>
    %121 = arith.addf %119, %120 : vector<2x32xf32>
    %122 = math.tanh %121 : vector<2x32xf32>
    %123 = arith.mulf %118, %122 : vector<2x32xf32>
    %c6 = arith.constant 6 : index
    %c0_29 = arith.constant 0 : index
    %124 = vector.load %arg12[%c6, %c0_29] : memref<16x32xf32, #tpu.memory_space<vmem>>, vector<2x32xf32>
    tpu.vector_store %arg12[%c6, %c0_29], %123 {strides = array<i32>} : memref<16x32xf32, #tpu.memory_space<vmem>>, vector<2x32xf32>,
    %125 = vector.extract_strided_slice %6 {offsets = [8, 0], sizes = [2, 128], strides = [1, 1]} : vector<16x128xf32> to vector<2x128xf32>
    %cst_30 = arith.constant dense<0.000000e+00> : vector<2x128xf32>
    %126 = tpu.matmul %123, %2, %cst_30 {dimension_numbers = #tpu.dot_dimension_numbers<[1], [0], [0], [1], [0, 0, 1, 1], [], []>} : vector<2x32xf32>, vector<32x128xf32>, vector<2x128xf32> -> vector<2x128xf32>
    %127 = arith.addf %125, %126 : vector<2x128xf32>
    %128 = vector.extract_strided_slice %127 {offsets = [0, 0], sizes = [2, 32], strides = [1, 1]} : vector<2x128xf32> to vector<2x32xf32>
    %129 = arith.negf %128 : vector<2x32xf32>
    %130 = math.exp %129 : vector<2x32xf32>
    %cst_31 = arith.constant 1.000000e+00 : f32
    %131 = vector.broadcast %cst_31 : f32 to vector<2x32xf32>
    %132 = arith.addf %131, %130 : vector<2x32xf32>
    %133 = arith.divf %131, %132 : vector<2x32xf32>
    %134 = vector.extract_strided_slice %127 {offsets = [0, 32], sizes = [2, 32], strides = [1, 1]} : vector<2x128xf32> to vector<2x32xf32>
    %135 = arith.negf %134 : vector<2x32xf32>
    %136 = math.exp %135 : vector<2x32xf32>
    %cst_32 = arith.constant 1.000000e+00 : f32
    %137 = vector.broadcast %cst_32 : f32 to vector<2x32xf32>
    %138 = arith.addf %137, %136 : vector<2x32xf32>
    %139 = arith.divf %137, %138 : vector<2x32xf32>
    %140 = vector.extract_strided_slice %127 {offsets = [0, 64], sizes = [2, 32], strides = [1, 1]} : vector<2x128xf32> to vector<2x32xf32>
    %141 = math.tanh %140 : vector<2x32xf32>
    %142 = vector.extract_strided_slice %127 {offsets = [0, 96], sizes = [2, 32], strides = [1, 1]} : vector<2x128xf32> to vector<2x32xf32>
    %143 = arith.negf %142 : vector<2x32xf32>
    %144 = math.exp %143 : vector<2x32xf32>
    %cst_33 = arith.constant 1.000000e+00 : f32
    %145 = vector.broadcast %cst_33 : f32 to vector<2x32xf32>
    %146 = arith.addf %145, %144 : vector<2x32xf32>
    %147 = arith.divf %145, %146 : vector<2x32xf32>
    %148 = arith.mulf %139, %121 : vector<2x32xf32>
    %149 = arith.mulf %133, %141 : vector<2x32xf32>
    %150 = arith.addf %148, %149 : vector<2x32xf32>
    %151 = math.tanh %150 : vector<2x32xf32>
    %152 = arith.mulf %147, %151 : vector<2x32xf32>
    %c8 = arith.constant 8 : index
    %c0_34 = arith.constant 0 : index
    %153 = vector.load %arg12[%c8, %c0_34] : memref<16x32xf32, #tpu.memory_space<vmem>>, vector<2x32xf32>
    tpu.vector_store %arg12[%c8, %c0_34], %152 {strides = array<i32>} : memref<16x32xf32, #tpu.memory_space<vmem>>, vector<2x32xf32>,
    %154 = vector.extract_strided_slice %6 {offsets = [10, 0], sizes = [2, 128], strides = [1, 1]} : vector<16x128xf32> to vector<2x128xf32>
    %cst_35 = arith.constant dense<0.000000e+00> : vector<2x128xf32>
    %155 = tpu.matmul %152, %2, %cst_35 {dimension_numbers = #tpu.dot_dimension_numbers<[1], [0], [0], [1], [0, 0, 1, 1], [], []>} : vector<2x32xf32>, vector<32x128xf32>, vector<2x128xf32> -> vector<2x128xf32>
    %156 = arith.addf %154, %155 : vector<2x128xf32>
    %157 = vector.extract_strided_slice %156 {offsets = [0, 0], sizes = [2, 32], strides = [1, 1]} : vector<2x128xf32> to vector<2x32xf32>
    %158 = arith.negf %157 : vector<2x32xf32>
    %159 = math.exp %158 : vector<2x32xf32>
    %cst_36 = arith.constant 1.000000e+00 : f32
    %160 = vector.broadcast %cst_36 : f32 to vector<2x32xf32>
    %161 = arith.addf %160, %159 : vector<2x32xf32>
    %162 = arith.divf %160, %161 : vector<2x32xf32>
    %163 = vector.extract_strided_slice %156 {offsets = [0, 32], sizes = [2, 32], strides = [1, 1]} : vector<2x128xf32> to vector<2x32xf32>
    %164 = arith.negf %163 : vector<2x32xf32>
    %165 = math.exp %164 : vector<2x32xf32>
    %cst_37 = arith.constant 1.000000e+00 : f32
    %166 = vector.broadcast %cst_37 : f32 to vector<2x32xf32>
    %167 = arith.addf %166, %165 : vector<2x32xf32>
    %168 = arith.divf %166, %167 : vector<2x32xf32>
    %169 = vector.extract_strided_slice %156 {offsets = [0, 64], sizes = [2, 32], strides = [1, 1]} : vector<2x128xf32> to vector<2x32xf32>
    %170 = math.tanh %169 : vector<2x32xf32>
    %171 = vector.extract_strided_slice %156 {offsets = [0, 96], sizes = [2, 32], strides = [1, 1]} : vector<2x128xf32> to vector<2x32xf32>
    %172 = arith.negf %171 : vector<2x32xf32>
    %173 = math.exp %172 : vector<2x32xf32>
    %cst_38 = arith.constant 1.000000e+00 : f32
    %174 = vector.broadcast %cst_38 : f32 to vector<2x32xf32>
    %175 = arith.addf %174, %173 : vector<2x32xf32>
    %176 = arith.divf %174, %175 : vector<2x32xf32>
    %177 = arith.mulf %168, %150 : vector<2x32xf32>
    %178 = arith.mulf %162, %170 : vector<2x32xf32>
    %179 = arith.addf %177, %178 : vector<2x32xf32>
    %180 = math.tanh %179 : vector<2x32xf32>
    %181 = arith.mulf %176, %180 : vector<2x32xf32>
    %c10 = arith.constant 10 : index
    %c0_39 = arith.constant 0 : index
    %182 = vector.load %arg12[%c10, %c0_39] : memref<16x32xf32, #tpu.memory_space<vmem>>, vector<2x32xf32>
    tpu.vector_store %arg12[%c10, %c0_39], %181 {strides = array<i32>} : memref<16x32xf32, #tpu.memory_space<vmem>>, vector<2x32xf32>,
    %183 = vector.extract_strided_slice %6 {offsets = [12, 0], sizes = [2, 128], strides = [1, 1]} : vector<16x128xf32> to vector<2x128xf32>
    %cst_40 = arith.constant dense<0.000000e+00> : vector<2x128xf32>
    %184 = tpu.matmul %181, %2, %cst_40 {dimension_numbers = #tpu.dot_dimension_numbers<[1], [0], [0], [1], [0, 0, 1, 1], [], []>} : vector<2x32xf32>, vector<32x128xf32>, vector<2x128xf32> -> vector<2x128xf32>
    %185 = arith.addf %183, %184 : vector<2x128xf32>
    %186 = vector.extract_strided_slice %185 {offsets = [0, 0], sizes = [2, 32], strides = [1, 1]} : vector<2x128xf32> to vector<2x32xf32>
    %187 = arith.negf %186 : vector<2x32xf32>
    %188 = math.exp %187 : vector<2x32xf32>
    %cst_41 = arith.constant 1.000000e+00 : f32
    %189 = vector.broadcast %cst_41 : f32 to vector<2x32xf32>
    %190 = arith.addf %189, %188 : vector<2x32xf32>
    %191 = arith.divf %189, %190 : vector<2x32xf32>
    %192 = vector.extract_strided_slice %185 {offsets = [0, 32], sizes = [2, 32], strides = [1, 1]} : vector<2x128xf32> to vector<2x32xf32>
    %193 = arith.negf %192 : vector<2x32xf32>
    %194 = math.exp %193 : vector<2x32xf32>
    %cst_42 = arith.constant 1.000000e+00 : f32
    %195 = vector.broadcast %cst_42 : f32 to vector<2x32xf32>
    %196 = arith.addf %195, %194 : vector<2x32xf32>
    %197 = arith.divf %195, %196 : vector<2x32xf32>
    %198 = vector.extract_strided_slice %185 {offsets = [0, 64], sizes = [2, 32], strides = [1, 1]} : vector<2x128xf32> to vector<2x32xf32>
    %199 = math.tanh %198 : vector<2x32xf32>
    %200 = vector.extract_strided_slice %185 {offsets = [0, 96], sizes = [2, 32], strides = [1, 1]} : vector<2x128xf32> to vector<2x32xf32>
    %201 = arith.negf %200 : vector<2x32xf32>
    %202 = math.exp %201 : vector<2x32xf32>
    %cst_43 = arith.constant 1.000000e+00 : f32
    %203 = vector.broadcast %cst_43 : f32 to vector<2x32xf32>
    %204 = arith.addf %203, %202 : vector<2x32xf32>
    %205 = arith.divf %203, %204 : vector<2x32xf32>
    %206 = arith.mulf %197, %179 : vector<2x32xf32>
    %207 = arith.mulf %191, %199 : vector<2x32xf32>
    %208 = arith.addf %206, %207 : vector<2x32xf32>
    %209 = math.tanh %208 : vector<2x32xf32>
    %210 = arith.mulf %205, %209 : vector<2x32xf32>
    %c12 = arith.constant 12 : index
    %c0_44 = arith.constant 0 : index
    %211 = vector.load %arg12[%c12, %c0_44] : memref<16x32xf32, #tpu.memory_space<vmem>>, vector<2x32xf32>
    tpu.vector_store %arg12[%c12, %c0_44], %210 {strides = array<i32>} : memref<16x32xf32, #tpu.memory_space<vmem>>, vector<2x32xf32>,
    %212 = vector.extract_strided_slice %6 {offsets = [14, 0], sizes = [2, 128], strides = [1, 1]} : vector<16x128xf32> to vector<2x128xf32>
    %cst_45 = arith.constant dense<0.000000e+00> : vector<2x128xf32>
    %213 = tpu.matmul %210, %2, %cst_45 {dimension_numbers = #tpu.dot_dimension_numbers<[1], [0], [0], [1], [0, 0, 1, 1], [], []>} : vector<2x32xf32>, vector<32x128xf32>, vector<2x128xf32> -> vector<2x128xf32>
    %214 = arith.addf %212, %213 : vector<2x128xf32>
    %215 = vector.extract_strided_slice %214 {offsets = [0, 0], sizes = [2, 32], strides = [1, 1]} : vector<2x128xf32> to vector<2x32xf32>
    %216 = arith.negf %215 : vector<2x32xf32>
    %217 = math.exp %216 : vector<2x32xf32>
    %cst_46 = arith.constant 1.000000e+00 : f32
    %218 = vector.broadcast %cst_46 : f32 to vector<2x32xf32>
    %219 = arith.addf %218, %217 : vector<2x32xf32>
    %220 = arith.divf %218, %219 : vector<2x32xf32>
    %221 = vector.extract_strided_slice %214 {offsets = [0, 32], sizes = [2, 32], strides = [1, 1]} : vector<2x128xf32> to vector<2x32xf32>
    %222 = arith.negf %221 : vector<2x32xf32>
    %223 = math.exp %222 : vector<2x32xf32>
    %cst_47 = arith.constant 1.000000e+00 : f32
    %224 = vector.broadcast %cst_47 : f32 to vector<2x32xf32>
    %225 = arith.addf %224, %223 : vector<2x32xf32>
    %226 = arith.divf %224, %225 : vector<2x32xf32>
    %227 = vector.extract_strided_slice %214 {offsets = [0, 64], sizes = [2, 32], strides = [1, 1]} : vector<2x128xf32> to vector<2x32xf32>
    %228 = math.tanh %227 : vector<2x32xf32>
    %229 = vector.extract_strided_slice %214 {offsets = [0, 96], sizes = [2, 32], strides = [1, 1]} : vector<2x128xf32> to vector<2x32xf32>
    %230 = arith.negf %229 : vector<2x32xf32>
    %231 = math.exp %230 : vector<2x32xf32>
    %cst_48 = arith.constant 1.000000e+00 : f32
    %232 = vector.broadcast %cst_48 : f32 to vector<2x32xf32>
    %233 = arith.addf %232, %231 : vector<2x32xf32>
    %234 = arith.divf %232, %233 : vector<2x32xf32>
    %235 = arith.mulf %226, %208 : vector<2x32xf32>
    %236 = arith.mulf %220, %228 : vector<2x32xf32>
    %237 = arith.addf %235, %236 : vector<2x32xf32>
    %238 = math.tanh %237 : vector<2x32xf32>
    %239 = arith.mulf %234, %238 : vector<2x32xf32>
    %c14 = arith.constant 14 : index
    %c0_49 = arith.constant 0 : index
    %240 = vector.load %arg12[%c14, %c0_49] : memref<16x32xf32, #tpu.memory_space<vmem>>, vector<2x32xf32>
    tpu.vector_store %arg12[%c14, %c0_49], %239 {strides = array<i32>} : memref<16x32xf32, #tpu.memory_space<vmem>>, vector<2x32xf32>,
    %c0_50 = arith.constant 0 : index
    %c0_51 = arith.constant 0 : index
    %241 = vector.load %arg12[%c0_50, %c0_51] : memref<16x32xf32, #tpu.memory_space<vmem>>, vector<16x32xf32>
    %c0_52 = arith.constant 0 : index
    %c0_53 = arith.constant 0 : index
    %242 = vector.load %arg4[%c0_52, %c0_53] : memref<32x128xf32, #tpu.memory_space<vmem>>, vector<32x128xf32>
    %c0_54 = arith.constant 0 : index
    %c0_55 = arith.constant 0 : index
    %243 = vector.load %arg5[%c0_54, %c0_55] : memref<32x128xf32, #tpu.memory_space<vmem>>, vector<32x128xf32>
    %c0_56 = arith.constant 0 : index
    %c0_57 = arith.constant 0 : index
    %244 = vector.load %arg6[%c0_56, %c0_57] : memref<1x128xf32, #tpu.memory_space<vmem>>, vector<1x128xf32>
    %cst_58 = arith.constant dense<0.000000e+00> : vector<16x128xf32>
    %245 = tpu.matmul %241, %242, %cst_58 {dimension_numbers = #tpu.dot_dimension_numbers<[1], [0], [0], [1], [0, 0, 1, 1], [], []>} : vector<16x32xf32>, vector<32x128xf32>, vector<16x128xf32> -> vector<16x128xf32>
    %246 = vector.broadcast %244 : vector<1x128xf32> to vector<16x128xf32>
    %247 = arith.addf %245, %246 : vector<16x128xf32>
    %cst_59 = arith.constant 0.000000e+00 : f32
    %248 = vector.broadcast %cst_59 : f32 to vector<2x32xf32>
    %cst_60 = arith.constant 0.000000e+00 : f32
    %249 = vector.broadcast %cst_60 : f32 to vector<2x32xf32>
    %250 = vector.extract_strided_slice %247 {offsets = [0, 0], sizes = [2, 128], strides = [1, 1]} : vector<16x128xf32> to vector<2x128xf32>
    %cst_61 = arith.constant dense<0.000000e+00> : vector<2x128xf32>
    %251 = tpu.matmul %248, %243, %cst_61 {dimension_numbers = #tpu.dot_dimension_numbers<[1], [0], [0], [1], [0, 0, 1, 1], [], []>} : vector<2x32xf32>, vector<32x128xf32>, vector<2x128xf32> -> vector<2x128xf32>
    %252 = arith.addf %250, %251 : vector<2x128xf32>
    %253 = vector.extract_strided_slice %252 {offsets = [0, 0], sizes = [2, 32], strides = [1, 1]} : vector<2x128xf32> to vector<2x32xf32>
    %254 = arith.negf %253 : vector<2x32xf32>
    %255 = math.exp %254 : vector<2x32xf32>
    %cst_62 = arith.constant 1.000000e+00 : f32
    %256 = vector.broadcast %cst_62 : f32 to vector<2x32xf32>
    %257 = arith.addf %256, %255 : vector<2x32xf32>
    %258 = arith.divf %256, %257 : vector<2x32xf32>
    %259 = vector.extract_strided_slice %252 {offsets = [0, 32], sizes = [2, 32], strides = [1, 1]} : vector<2x128xf32> to vector<2x32xf32>
    %260 = arith.negf %259 : vector<2x32xf32>
    %261 = math.exp %260 : vector<2x32xf32>
    %cst_63 = arith.constant 1.000000e+00 : f32
    %262 = vector.broadcast %cst_63 : f32 to vector<2x32xf32>
    %263 = arith.addf %262, %261 : vector<2x32xf32>
    %264 = arith.divf %262, %263 : vector<2x32xf32>
    %265 = vector.extract_strided_slice %252 {offsets = [0, 64], sizes = [2, 32], strides = [1, 1]} : vector<2x128xf32> to vector<2x32xf32>
    %266 = math.tanh %265 : vector<2x32xf32>
    %267 = vector.extract_strided_slice %252 {offsets = [0, 96], sizes = [2, 32], strides = [1, 1]} : vector<2x128xf32> to vector<2x32xf32>
    %268 = arith.negf %267 : vector<2x32xf32>
    %269 = math.exp %268 : vector<2x32xf32>
    %cst_64 = arith.constant 1.000000e+00 : f32
    %270 = vector.broadcast %cst_64 : f32 to vector<2x32xf32>
    %271 = arith.addf %270, %269 : vector<2x32xf32>
    %272 = arith.divf %270, %271 : vector<2x32xf32>
    %273 = arith.mulf %264, %249 : vector<2x32xf32>
    %274 = arith.mulf %258, %266 : vector<2x32xf32>
    %275 = arith.addf %273, %274 : vector<2x32xf32>
    %276 = math.tanh %275 : vector<2x32xf32>
    %277 = arith.mulf %272, %276 : vector<2x32xf32>
    %c0_65 = arith.constant 0 : index
    %c0_66 = arith.constant 0 : index
    %278 = vector.load %arg12[%c0_65, %c0_66] : memref<16x32xf32, #tpu.memory_space<vmem>>, vector<2x32xf32>
    tpu.vector_store %arg12[%c0_65, %c0_66], %277 {strides = array<i32>} : memref<16x32xf32, #tpu.memory_space<vmem>>, vector<2x32xf32>,
    %279 = vector.extract_strided_slice %247 {offsets = [2, 0], sizes = [2, 128], strides = [1, 1]} : vector<16x128xf32> to vector<2x128xf32>
    %cst_67 = arith.constant dense<0.000000e+00> : vector<2x128xf32>
    %280 = tpu.matmul %277, %243, %cst_67 {dimension_numbers = #tpu.dot_dimension_numbers<[1], [0], [0], [1], [0, 0, 1, 1], [], []>} : vector<2x32xf32>, vector<32x128xf32>, vector<2x128xf32> -> vector<2x128xf32>
    %281 = arith.addf %279, %280 : vector<2x128xf32>
    %282 = vector.extract_strided_slice %281 {offsets = [0, 0], sizes = [2, 32], strides = [1, 1]} : vector<2x128xf32> to vector<2x32xf32>
    %283 = arith.negf %282 : vector<2x32xf32>
    %284 = math.exp %283 : vector<2x32xf32>
    %cst_68 = arith.constant 1.000000e+00 : f32
    %285 = vector.broadcast %cst_68 : f32 to vector<2x32xf32>
    %286 = arith.addf %285, %284 : vector<2x32xf32>
    %287 = arith.divf %285, %286 : vector<2x32xf32>
    %288 = vector.extract_strided_slice %281 {offsets = [0, 32], sizes = [2, 32], strides = [1, 1]} : vector<2x128xf32> to vector<2x32xf32>
    %289 = arith.negf %288 : vector<2x32xf32>
    %290 = math.exp %289 : vector<2x32xf32>
    %cst_69 = arith.constant 1.000000e+00 : f32
    %291 = vector.broadcast %cst_69 : f32 to vector<2x32xf32>
    %292 = arith.addf %291, %290 : vector<2x32xf32>
    %293 = arith.divf %291, %292 : vector<2x32xf32>
    %294 = vector.extract_strided_slice %281 {offsets = [0, 64], sizes = [2, 32], strides = [1, 1]} : vector<2x128xf32> to vector<2x32xf32>
    %295 = math.tanh %294 : vector<2x32xf32>
    %296 = vector.extract_strided_slice %281 {offsets = [0, 96], sizes = [2, 32], strides = [1, 1]} : vector<2x128xf32> to vector<2x32xf32>
    %297 = arith.negf %296 : vector<2x32xf32>
    %298 = math.exp %297 : vector<2x32xf32>
    %cst_70 = arith.constant 1.000000e+00 : f32
    %299 = vector.broadcast %cst_70 : f32 to vector<2x32xf32>
    %300 = arith.addf %299, %298 : vector<2x32xf32>
    %301 = arith.divf %299, %300 : vector<2x32xf32>
    %302 = arith.mulf %293, %275 : vector<2x32xf32>
    %303 = arith.mulf %287, %295 : vector<2x32xf32>
    %304 = arith.addf %302, %303 : vector<2x32xf32>
    %305 = math.tanh %304 : vector<2x32xf32>
    %306 = arith.mulf %301, %305 : vector<2x32xf32>
    %c2_71 = arith.constant 2 : index
    %c0_72 = arith.constant 0 : index
    %307 = vector.load %arg12[%c2_71, %c0_72] : memref<16x32xf32, #tpu.memory_space<vmem>>, vector<2x32xf32>
    tpu.vector_store %arg12[%c2_71, %c0_72], %306 {strides = array<i32>} : memref<16x32xf32, #tpu.memory_space<vmem>>, vector<2x32xf32>,
    %308 = vector.extract_strided_slice %247 {offsets = [4, 0], sizes = [2, 128], strides = [1, 1]} : vector<16x128xf32> to vector<2x128xf32>
    %cst_73 = arith.constant dense<0.000000e+00> : vector<2x128xf32>
    %309 = tpu.matmul %306, %243, %cst_73 {dimension_numbers = #tpu.dot_dimension_numbers<[1], [0], [0], [1], [0, 0, 1, 1], [], []>} : vector<2x32xf32>, vector<32x128xf32>, vector<2x128xf32> -> vector<2x128xf32>
    %310 = arith.addf %308, %309 : vector<2x128xf32>
    %311 = vector.extract_strided_slice %310 {offsets = [0, 0], sizes = [2, 32], strides = [1, 1]} : vector<2x128xf32> to vector<2x32xf32>
    %312 = arith.negf %311 : vector<2x32xf32>
    %313 = math.exp %312 : vector<2x32xf32>
    %cst_74 = arith.constant 1.000000e+00 : f32
    %314 = vector.broadcast %cst_74 : f32 to vector<2x32xf32>
    %315 = arith.addf %314, %313 : vector<2x32xf32>
    %316 = arith.divf %314, %315 : vector<2x32xf32>
    %317 = vector.extract_strided_slice %310 {offsets = [0, 32], sizes = [2, 32], strides = [1, 1]} : vector<2x128xf32> to vector<2x32xf32>
    %318 = arith.negf %317 : vector<2x32xf32>
    %319 = math.exp %318 : vector<2x32xf32>
    %cst_75 = arith.constant 1.000000e+00 : f32
    %320 = vector.broadcast %cst_75 : f32 to vector<2x32xf32>
    %321 = arith.addf %320, %319 : vector<2x32xf32>
    %322 = arith.divf %320, %321 : vector<2x32xf32>
    %323 = vector.extract_strided_slice %310 {offsets = [0, 64], sizes = [2, 32], strides = [1, 1]} : vector<2x128xf32> to vector<2x32xf32>
    %324 = math.tanh %323 : vector<2x32xf32>
    %325 = vector.extract_strided_slice %310 {offsets = [0, 96], sizes = [2, 32], strides = [1, 1]} : vector<2x128xf32> to vector<2x32xf32>
    %326 = arith.negf %325 : vector<2x32xf32>
    %327 = math.exp %326 : vector<2x32xf32>
    %cst_76 = arith.constant 1.000000e+00 : f32
    %328 = vector.broadcast %cst_76 : f32 to vector<2x32xf32>
    %329 = arith.addf %328, %327 : vector<2x32xf32>
    %330 = arith.divf %328, %329 : vector<2x32xf32>
    %331 = arith.mulf %322, %304 : vector<2x32xf32>
    %332 = arith.mulf %316, %324 : vector<2x32xf32>
    %333 = arith.addf %331, %332 : vector<2x32xf32>
    %334 = math.tanh %333 : vector<2x32xf32>
    %335 = arith.mulf %330, %334 : vector<2x32xf32>
    %c4_77 = arith.constant 4 : index
    %c0_78 = arith.constant 0 : index
    %336 = vector.load %arg12[%c4_77, %c0_78] : memref<16x32xf32, #tpu.memory_space<vmem>>, vector<2x32xf32>
    tpu.vector_store %arg12[%c4_77, %c0_78], %335 {strides = array<i32>} : memref<16x32xf32, #tpu.memory_space<vmem>>, vector<2x32xf32>,
    %337 = vector.extract_strided_slice %247 {offsets = [6, 0], sizes = [2, 128], strides = [1, 1]} : vector<16x128xf32> to vector<2x128xf32>
    %cst_79 = arith.constant dense<0.000000e+00> : vector<2x128xf32>
    %338 = tpu.matmul %335, %243, %cst_79 {dimension_numbers = #tpu.dot_dimension_numbers<[1], [0], [0], [1], [0, 0, 1, 1], [], []>} : vector<2x32xf32>, vector<32x128xf32>, vector<2x128xf32> -> vector<2x128xf32>
    %339 = arith.addf %337, %338 : vector<2x128xf32>
    %340 = vector.extract_strided_slice %339 {offsets = [0, 0], sizes = [2, 32], strides = [1, 1]} : vector<2x128xf32> to vector<2x32xf32>
    %341 = arith.negf %340 : vector<2x32xf32>
    %342 = math.exp %341 : vector<2x32xf32>
    %cst_80 = arith.constant 1.000000e+00 : f32
    %343 = vector.broadcast %cst_80 : f32 to vector<2x32xf32>
    %344 = arith.addf %343, %342 : vector<2x32xf32>
    %345 = arith.divf %343, %344 : vector<2x32xf32>
    %346 = vector.extract_strided_slice %339 {offsets = [0, 32], sizes = [2, 32], strides = [1, 1]} : vector<2x128xf32> to vector<2x32xf32>
    %347 = arith.negf %346 : vector<2x32xf32>
    %348 = math.exp %347 : vector<2x32xf32>
    %cst_81 = arith.constant 1.000000e+00 : f32
    %349 = vector.broadcast %cst_81 : f32 to vector<2x32xf32>
    %350 = arith.addf %349, %348 : vector<2x32xf32>
    %351 = arith.divf %349, %350 : vector<2x32xf32>
    %352 = vector.extract_strided_slice %339 {offsets = [0, 64], sizes = [2, 32], strides = [1, 1]} : vector<2x128xf32> to vector<2x32xf32>
    %353 = math.tanh %352 : vector<2x32xf32>
    %354 = vector.extract_strided_slice %339 {offsets = [0, 96], sizes = [2, 32], strides = [1, 1]} : vector<2x128xf32> to vector<2x32xf32>
    %355 = arith.negf %354 : vector<2x32xf32>
    %356 = math.exp %355 : vector<2x32xf32>
    %cst_82 = arith.constant 1.000000e+00 : f32
    %357 = vector.broadcast %cst_82 : f32 to vector<2x32xf32>
    %358 = arith.addf %357, %356 : vector<2x32xf32>
    %359 = arith.divf %357, %358 : vector<2x32xf32>
    %360 = arith.mulf %351, %333 : vector<2x32xf32>
    %361 = arith.mulf %345, %353 : vector<2x32xf32>
    %362 = arith.addf %360, %361 : vector<2x32xf32>
    %363 = math.tanh %362 : vector<2x32xf32>
    %364 = arith.mulf %359, %363 : vector<2x32xf32>
    %c6_83 = arith.constant 6 : index
    %c0_84 = arith.constant 0 : index
    %365 = vector.load %arg12[%c6_83, %c0_84] : memref<16x32xf32, #tpu.memory_space<vmem>>, vector<2x32xf32>
    tpu.vector_store %arg12[%c6_83, %c0_84], %364 {strides = array<i32>} : memref<16x32xf32, #tpu.memory_space<vmem>>, vector<2x32xf32>,
    %366 = vector.extract_strided_slice %247 {offsets = [8, 0], sizes = [2, 128], strides = [1, 1]} : vector<16x128xf32> to vector<2x128xf32>
    %cst_85 = arith.constant dense<0.000000e+00> : vector<2x128xf32>
    %367 = tpu.matmul %364, %243, %cst_85 {dimension_numbers = #tpu.dot_dimension_numbers<[1], [0], [0], [1], [0, 0, 1, 1], [], []>} : vector<2x32xf32>, vector<32x128xf32>, vector<2x128xf32> -> vector<2x128xf32>
    %368 = arith.addf %366, %367 : vector<2x128xf32>
    %369 = vector.extract_strided_slice %368 {offsets = [0, 0], sizes = [2, 32], strides = [1, 1]} : vector<2x128xf32> to vector<2x32xf32>
    %370 = arith.negf %369 : vector<2x32xf32>
    %371 = math.exp %370 : vector<2x32xf32>
    %cst_86 = arith.constant 1.000000e+00 : f32
    %372 = vector.broadcast %cst_86 : f32 to vector<2x32xf32>
    %373 = arith.addf %372, %371 : vector<2x32xf32>
    %374 = arith.divf %372, %373 : vector<2x32xf32>
    %375 = vector.extract_strided_slice %368 {offsets = [0, 32], sizes = [2, 32], strides = [1, 1]} : vector<2x128xf32> to vector<2x32xf32>
    %376 = arith.negf %375 : vector<2x32xf32>
    %377 = math.exp %376 : vector<2x32xf32>
    %cst_87 = arith.constant 1.000000e+00 : f32
    %378 = vector.broadcast %cst_87 : f32 to vector<2x32xf32>
    %379 = arith.addf %378, %377 : vector<2x32xf32>
    %380 = arith.divf %378, %379 : vector<2x32xf32>
    %381 = vector.extract_strided_slice %368 {offsets = [0, 64], sizes = [2, 32], strides = [1, 1]} : vector<2x128xf32> to vector<2x32xf32>
    %382 = math.tanh %381 : vector<2x32xf32>
    %383 = vector.extract_strided_slice %368 {offsets = [0, 96], sizes = [2, 32], strides = [1, 1]} : vector<2x128xf32> to vector<2x32xf32>
    %384 = arith.negf %383 : vector<2x32xf32>
    %385 = math.exp %384 : vector<2x32xf32>
    %cst_88 = arith.constant 1.000000e+00 : f32
    %386 = vector.broadcast %cst_88 : f32 to vector<2x32xf32>
    %387 = arith.addf %386, %385 : vector<2x32xf32>
    %388 = arith.divf %386, %387 : vector<2x32xf32>
    %389 = arith.mulf %380, %362 : vector<2x32xf32>
    %390 = arith.mulf %374, %382 : vector<2x32xf32>
    %391 = arith.addf %389, %390 : vector<2x32xf32>
    %392 = math.tanh %391 : vector<2x32xf32>
    %393 = arith.mulf %388, %392 : vector<2x32xf32>
    %c8_89 = arith.constant 8 : index
    %c0_90 = arith.constant 0 : index
    %394 = vector.load %arg12[%c8_89, %c0_90] : memref<16x32xf32, #tpu.memory_space<vmem>>, vector<2x32xf32>
    tpu.vector_store %arg12[%c8_89, %c0_90], %393 {strides = array<i32>} : memref<16x32xf32, #tpu.memory_space<vmem>>, vector<2x32xf32>,
    %395 = vector.extract_strided_slice %247 {offsets = [10, 0], sizes = [2, 128], strides = [1, 1]} : vector<16x128xf32> to vector<2x128xf32>
    %cst_91 = arith.constant dense<0.000000e+00> : vector<2x128xf32>
    %396 = tpu.matmul %393, %243, %cst_91 {dimension_numbers = #tpu.dot_dimension_numbers<[1], [0], [0], [1], [0, 0, 1, 1], [], []>} : vector<2x32xf32>, vector<32x128xf32>, vector<2x128xf32> -> vector<2x128xf32>
    %397 = arith.addf %395, %396 : vector<2x128xf32>
    %398 = vector.extract_strided_slice %397 {offsets = [0, 0], sizes = [2, 32], strides = [1, 1]} : vector<2x128xf32> to vector<2x32xf32>
    %399 = arith.negf %398 : vector<2x32xf32>
    %400 = math.exp %399 : vector<2x32xf32>
    %cst_92 = arith.constant 1.000000e+00 : f32
    %401 = vector.broadcast %cst_92 : f32 to vector<2x32xf32>
    %402 = arith.addf %401, %400 : vector<2x32xf32>
    %403 = arith.divf %401, %402 : vector<2x32xf32>
    %404 = vector.extract_strided_slice %397 {offsets = [0, 32], sizes = [2, 32], strides = [1, 1]} : vector<2x128xf32> to vector<2x32xf32>
    %405 = arith.negf %404 : vector<2x32xf32>
    %406 = math.exp %405 : vector<2x32xf32>
    %cst_93 = arith.constant 1.000000e+00 : f32
    %407 = vector.broadcast %cst_93 : f32 to vector<2x32xf32>
    %408 = arith.addf %407, %406 : vector<2x32xf32>
    %409 = arith.divf %407, %408 : vector<2x32xf32>
    %410 = vector.extract_strided_slice %397 {offsets = [0, 64], sizes = [2, 32], strides = [1, 1]} : vector<2x128xf32> to vector<2x32xf32>
    %411 = math.tanh %410 : vector<2x32xf32>
    %412 = vector.extract_strided_slice %397 {offsets = [0, 96], sizes = [2, 32], strides = [1, 1]} : vector<2x128xf32> to vector<2x32xf32>
    %413 = arith.negf %412 : vector<2x32xf32>
    %414 = math.exp %413 : vector<2x32xf32>
    %cst_94 = arith.constant 1.000000e+00 : f32
    %415 = vector.broadcast %cst_94 : f32 to vector<2x32xf32>
    %416 = arith.addf %415, %414 : vector<2x32xf32>
    %417 = arith.divf %415, %416 : vector<2x32xf32>
    %418 = arith.mulf %409, %391 : vector<2x32xf32>
    %419 = arith.mulf %403, %411 : vector<2x32xf32>
    %420 = arith.addf %418, %419 : vector<2x32xf32>
    %421 = math.tanh %420 : vector<2x32xf32>
    %422 = arith.mulf %417, %421 : vector<2x32xf32>
    %c10_95 = arith.constant 10 : index
    %c0_96 = arith.constant 0 : index
    %423 = vector.load %arg12[%c10_95, %c0_96] : memref<16x32xf32, #tpu.memory_space<vmem>>, vector<2x32xf32>
    tpu.vector_store %arg12[%c10_95, %c0_96], %422 {strides = array<i32>} : memref<16x32xf32, #tpu.memory_space<vmem>>, vector<2x32xf32>,
    %424 = vector.extract_strided_slice %247 {offsets = [12, 0], sizes = [2, 128], strides = [1, 1]} : vector<16x128xf32> to vector<2x128xf32>
    %cst_97 = arith.constant dense<0.000000e+00> : vector<2x128xf32>
    %425 = tpu.matmul %422, %243, %cst_97 {dimension_numbers = #tpu.dot_dimension_numbers<[1], [0], [0], [1], [0, 0, 1, 1], [], []>} : vector<2x32xf32>, vector<32x128xf32>, vector<2x128xf32> -> vector<2x128xf32>
    %426 = arith.addf %424, %425 : vector<2x128xf32>
    %427 = vector.extract_strided_slice %426 {offsets = [0, 0], sizes = [2, 32], strides = [1, 1]} : vector<2x128xf32> to vector<2x32xf32>
    %428 = arith.negf %427 : vector<2x32xf32>
    %429 = math.exp %428 : vector<2x32xf32>
    %cst_98 = arith.constant 1.000000e+00 : f32
    %430 = vector.broadcast %cst_98 : f32 to vector<2x32xf32>
    %431 = arith.addf %430, %429 : vector<2x32xf32>
    %432 = arith.divf %430, %431 : vector<2x32xf32>
    %433 = vector.extract_strided_slice %426 {offsets = [0, 32], sizes = [2, 32], strides = [1, 1]} : vector<2x128xf32> to vector<2x32xf32>
    %434 = arith.negf %433 : vector<2x32xf32>
    %435 = math.exp %434 : vector<2x32xf32>
    %cst_99 = arith.constant 1.000000e+00 : f32
    %436 = vector.broadcast %cst_99 : f32 to vector<2x32xf32>
    %437 = arith.addf %436, %435 : vector<2x32xf32>
    %438 = arith.divf %436, %437 : vector<2x32xf32>
    %439 = vector.extract_strided_slice %426 {offsets = [0, 64], sizes = [2, 32], strides = [1, 1]} : vector<2x128xf32> to vector<2x32xf32>
    %440 = math.tanh %439 : vector<2x32xf32>
    %441 = vector.extract_strided_slice %426 {offsets = [0, 96], sizes = [2, 32], strides = [1, 1]} : vector<2x128xf32> to vector<2x32xf32>
    %442 = arith.negf %441 : vector<2x32xf32>
    %443 = math.exp %442 : vector<2x32xf32>
    %cst_100 = arith.constant 1.000000e+00 : f32
    %444 = vector.broadcast %cst_100 : f32 to vector<2x32xf32>
    %445 = arith.addf %444, %443 : vector<2x32xf32>
    %446 = arith.divf %444, %445 : vector<2x32xf32>
    %447 = arith.mulf %438, %420 : vector<2x32xf32>
    %448 = arith.mulf %432, %440 : vector<2x32xf32>
    %449 = arith.addf %447, %448 : vector<2x32xf32>
    %450 = math.tanh %449 : vector<2x32xf32>
    %451 = arith.mulf %446, %450 : vector<2x32xf32>
    %c12_101 = arith.constant 12 : index
    %c0_102 = arith.constant 0 : index
    %452 = vector.load %arg12[%c12_101, %c0_102] : memref<16x32xf32, #tpu.memory_space<vmem>>, vector<2x32xf32>
    tpu.vector_store %arg12[%c12_101, %c0_102], %451 {strides = array<i32>} : memref<16x32xf32, #tpu.memory_space<vmem>>, vector<2x32xf32>,
    %453 = vector.extract_strided_slice %247 {offsets = [14, 0], sizes = [2, 128], strides = [1, 1]} : vector<16x128xf32> to vector<2x128xf32>
    %cst_103 = arith.constant dense<0.000000e+00> : vector<2x128xf32>
    %454 = tpu.matmul %451, %243, %cst_103 {dimension_numbers = #tpu.dot_dimension_numbers<[1], [0], [0], [1], [0, 0, 1, 1], [], []>} : vector<2x32xf32>, vector<32x128xf32>, vector<2x128xf32> -> vector<2x128xf32>
    %455 = arith.addf %453, %454 : vector<2x128xf32>
    %456 = vector.extract_strided_slice %455 {offsets = [0, 0], sizes = [2, 32], strides = [1, 1]} : vector<2x128xf32> to vector<2x32xf32>
    %457 = arith.negf %456 : vector<2x32xf32>
    %458 = math.exp %457 : vector<2x32xf32>
    %cst_104 = arith.constant 1.000000e+00 : f32
    %459 = vector.broadcast %cst_104 : f32 to vector<2x32xf32>
    %460 = arith.addf %459, %458 : vector<2x32xf32>
    %461 = arith.divf %459, %460 : vector<2x32xf32>
    %462 = vector.extract_strided_slice %455 {offsets = [0, 32], sizes = [2, 32], strides = [1, 1]} : vector<2x128xf32> to vector<2x32xf32>
    %463 = arith.negf %462 : vector<2x32xf32>
    %464 = math.exp %463 : vector<2x32xf32>
    %cst_105 = arith.constant 1.000000e+00 : f32
    %465 = vector.broadcast %cst_105 : f32 to vector<2x32xf32>
    %466 = arith.addf %465, %464 : vector<2x32xf32>
    %467 = arith.divf %465, %466 : vector<2x32xf32>
    %468 = vector.extract_strided_slice %455 {offsets = [0, 64], sizes = [2, 32], strides = [1, 1]} : vector<2x128xf32> to vector<2x32xf32>
    %469 = math.tanh %468 : vector<2x32xf32>
    %470 = vector.extract_strided_slice %455 {offsets = [0, 96], sizes = [2, 32], strides = [1, 1]} : vector<2x128xf32> to vector<2x32xf32>
    %471 = arith.negf %470 : vector<2x32xf32>
    %472 = math.exp %471 : vector<2x32xf32>
    %cst_106 = arith.constant 1.000000e+00 : f32
    %473 = vector.broadcast %cst_106 : f32 to vector<2x32xf32>
    %474 = arith.addf %473, %472 : vector<2x32xf32>
    %475 = arith.divf %473, %474 : vector<2x32xf32>
    %476 = arith.mulf %467, %449 : vector<2x32xf32>
    %477 = arith.mulf %461, %469 : vector<2x32xf32>
    %478 = arith.addf %476, %477 : vector<2x32xf32>
    %479 = math.tanh %478 : vector<2x32xf32>
    %480 = arith.mulf %475, %479 : vector<2x32xf32>
    %c14_107 = arith.constant 14 : index
    %c0_108 = arith.constant 0 : index
    %481 = vector.load %arg12[%c14_107, %c0_108] : memref<16x32xf32, #tpu.memory_space<vmem>>, vector<2x32xf32>
    tpu.vector_store %arg12[%c14_107, %c0_108], %480 {strides = array<i32>} : memref<16x32xf32, #tpu.memory_space<vmem>>, vector<2x32xf32>,
    %c0_109 = arith.constant 0 : index
    %c0_110 = arith.constant 0 : index
    %482 = vector.load %arg12[%c0_109, %c0_110] : memref<16x32xf32, #tpu.memory_space<vmem>>, vector<16x32xf32>
    %c0_111 = arith.constant 0 : index
    %c0_112 = arith.constant 0 : index
    %483 = vector.load %arg7[%c0_111, %c0_112] : memref<32x128xf32, #tpu.memory_space<vmem>>, vector<32x128xf32>
    %cst_113 = arith.constant dense<0.000000e+00> : vector<16x128xf32>
    %484 = tpu.matmul %482, %483, %cst_113 {dimension_numbers = #tpu.dot_dimension_numbers<[1], [0], [0], [1], [0, 0, 1, 1], [], []>} : vector<16x32xf32>, vector<32x128xf32>, vector<16x128xf32> -> vector<16x128xf32>
    %c0_114 = arith.constant 0 : index
    %c0_115 = arith.constant 0 : index
    %485 = vector.load %arg8[%c0_114, %c0_115] : memref<1x128xf32, #tpu.memory_space<vmem>>, vector<1x128xf32>
    %486 = vector.broadcast %485 : vector<1x128xf32> to vector<16x128xf32>
    %487 = arith.addf %484, %486 : vector<16x128xf32>
    %cst_116 = arith.constant 0.000000e+00 : f32
    %488 = vector.broadcast %cst_116 : f32 to vector<16x128xf32>
    %489 = arith.maximumf %487, %488 : vector<16x128xf32>
    %c0_117 = arith.constant 0 : index
    %c0_118 = arith.constant 0 : index
    %490 = vector.load %arg9[%c0_117, %c0_118] : memref<128x128xf32, #tpu.memory_space<vmem>>, vector<128x128xf32>
    %cst_119 = arith.constant dense<0.000000e+00> : vector<16x128xf32>
    %491 = tpu.matmul %489, %490, %cst_119 {dimension_numbers = #tpu.dot_dimension_numbers<[1], [0], [0], [1], [0, 0, 1, 1], [], []>} : vector<16x128xf32>, vector<128x128xf32>, vector<16x128xf32> -> vector<16x128xf32>
    %c0_120 = arith.constant 0 : index
    %c0_121 = arith.constant 0 : index
    %492 = vector.load %arg10[%c0_120, %c0_121] : memref<1x128xf32, #tpu.memory_space<vmem>>, vector<1x128xf32>
    %493 = vector.broadcast %492 : vector<1x128xf32> to vector<16x128xf32>
    %494 = arith.addf %491, %493 : vector<16x128xf32>
    %c0_122 = arith.constant 0 : index
    %c0_123 = arith.constant 0 : index
    %495 = vector.load %arg11[%c0_122, %c0_123] : memref<16x128xf32, #tpu.memory_space<vmem>>, vector<16x128xf32>
    tpu.vector_store %arg11[%c0_122, %c0_123], %494 {strides = array<i32>} : memref<16x128xf32, #tpu.memory_space<vmem>>, vector<16x128xf32>,
    return
  }
}

</mosaic_0001>

<llo_original>
// kernel: lstm_net_forward.1
$region0: #{lstm_net_forward.1}
  #allocation0 [shape = 'u32[]', space=smem, size = 0x4, offset = 0x4, fixed_abs, tag = 'smem constant byte address 0x4 - core index']
  #allocation1 [shape = 'u32[72,128]{1,0:T(1,128)}', space=vmem, size = 0x9000, scoped, tag = 'internal scratch']
  #allocation2 [shape = 'f32[16,32]{1,0:T(8,128)}', space=vmem, size = 0x2000, scoped, tag = 'scratch operand']
  %s0 = inlined_call_operand.vmem [shape: f32[16,16], index: 0, kind: input, shape index: {}]
  %s1 = inlined_call_operand.vmem [shape: f32[16,128], index: 1, kind: input, shape index: {}]
  %s2 = inlined_call_operand.vmem [shape: f32[32,128], index: 2, kind: input, shape index: {}]
  %s3 = inlined_call_operand.vmem [shape: f32[1,128], index: 3, kind: input, shape index: {}]
  %s4 = inlined_call_operand.vmem [shape: f32[32,128], index: 4, kind: input, shape index: {}]
  %s5 = inlined_call_operand.vmem [shape: f32[32,128], index: 5, kind: input, shape index: {}]
  %s6 = inlined_call_operand.vmem [shape: f32[1,128], index: 6, kind: input, shape index: {}]
  %s7 = inlined_call_operand.vmem [shape: f32[32,128], index: 7, kind: input, shape index: {}]
  %s8 = inlined_call_operand.vmem [shape: f32[1,128], index: 8, kind: input, shape index: {}]
  %s9 = inlined_call_operand.vmem [shape: f32[128,128], index: 9, kind: input, shape index: {}]
  %s10 = inlined_call_operand.vmem [shape: f32[1,128], index: 10, kind: input, shape index: {}]
  %s11 = inlined_call_operand.vmem [shape: f32[16,128], index: 11, kind: output, shape index: {}]
  %s12 = sld [smem:[#allocation0]]
  $region54: #{lstm_net_forward.1} parent=0
    _
  %s14 = ssub.s32 1, %s12
  %s15 = scalar_select 0, %s14, %s12
  // Predicated region
  $region2: #{lstm_net_forward.1} parent=0 // pred_check
    _
  $region3: #{lstm_net_forward.1} parent=0 // pred_check_branch
    %17 = sbr.rel (0) target = $region5
  $region4: #{lstm_net_forward.1} parent=0 // pred_region
    _
  $region5: #{lstm_net_forward.1} parent=0 // pred_fallthru
    _
  // Predicated region
  $region6: #{lstm_net_forward.1} parent=0 // pred_check
    _
  $region7: #{lstm_net_forward.1} parent=0 // pred_check_branch
    %19 = sbr.rel (0) target = $region9
  $region8: #{lstm_net_forward.1} parent=0 // pred_region
    _
  $region9: #{lstm_net_forward.1} parent=0 // pred_fallthru
    _
  // Predicated region
  $region10: #{lstm_net_forward.1} parent=0 // pred_check
    _
  $region11: #{lstm_net_forward.1} parent=0 // pred_check_branch
    %21 = sbr.rel (0) target = $region13
  $region12: #{lstm_net_forward.1} parent=0 // pred_region
    _
  $region13: #{lstm_net_forward.1} parent=0 // pred_fallthru
    _
  // Predicated region
  $region14: #{lstm_net_forward.1} parent=0 // pred_check
    _
  $region15: #{lstm_net_forward.1} parent=0 // pred_check_branch
    %23 = sbr.rel (0) target = $region17
  $region16: #{lstm_net_forward.1} parent=0 // pred_region
    _
  $region17: #{lstm_net_forward.1} parent=0 // pred_fallthru
    _
  // Predicated region
  $region18: #{lstm_net_forward.1} parent=0 // pred_check
    _
  $region19: #{lstm_net_forward.1} parent=0 // pred_check_branch
    %25 = sbr.rel (0) target = $region21
  $region20: #{lstm_net_forward.1} parent=0 // pred_region
    _
  $region21: #{lstm_net_forward.1} parent=0 // pred_fallthru
    _
  // Predicated region
  $region22: #{lstm_net_forward.1} parent=0 // pred_check
    _
  $region23: #{lstm_net_forward.1} parent=0 // pred_check_branch
    %27 = sbr.rel (0) target = $region25
  $region24: #{lstm_net_forward.1} parent=0 // pred_region
    _
  $region25: #{lstm_net_forward.1} parent=0 // pred_fallthru
    _
  // Predicated region
  $region26: #{lstm_net_forward.1} parent=0 // pred_check
    _
  $region27: #{lstm_net_forward.1} parent=0 // pred_check_branch
    %29 = sbr.rel (0) target = $region29
  $region28: #{lstm_net_forward.1} parent=0 // pred_region
    _
  $region29: #{lstm_net_forward.1} parent=0 // pred_fallthru
    _
  // Predicated region
  $region30: #{lstm_net_forward.1} parent=0 // pred_check
    _
  $region31: #{lstm_net_forward.1} parent=0 // pred_check_branch
    %31 = sbr.rel (0) target = $region33
  $region32: #{lstm_net_forward.1} parent=0 // pred_region
    _
  $region33: #{lstm_net_forward.1} parent=0 // pred_fallthru
    _
  // Predicated region
  $region34: #{lstm_net_forward.1} parent=0 // pred_check
    _
  $region35: #{lstm_net_forward.1} parent=0 // pred_check_branch
    %33 = sbr.rel (0) target = $region37
  $region36: #{lstm_net_forward.1} parent=0 // pred_region
    _
  $region37: #{lstm_net_forward.1} parent=0 // pred_fallthru
    _
  // Predicated region
  $region38: #{lstm_net_forward.1} parent=0 // pred_check
    _
  $region39: #{lstm_net_forward.1} parent=0 // pred_check_branch
    %35 = sbr.rel (0) target = $region41
  $region40: #{lstm_net_forward.1} parent=0 // pred_region
    _
  $region41: #{lstm_net_forward.1} parent=0 // pred_fallthru
    _
  // Predicated region
  $region42: #{lstm_net_forward.1} parent=0 // pred_check
    _
  $region43: #{lstm_net_forward.1} parent=0 // pred_check_branch
    %37 = sbr.rel (0) target = $region45
  $region44: #{lstm_net_forward.1} parent=0 // pred_region
    _
  $region45: #{lstm_net_forward.1} parent=0 // pred_fallthru
    _
  %v38 = vld [vmem:[%s0] sm:$0xff]
  %v39 = vld [vmem:[%s0 + $0x8] sm:$0xff]
  %v40 = vld [vmem:[%s1] sm:$0xff]
  %v41 = vld [vmem:[%s1 + $0x8] sm:$0xff]
  %v42 = vld [vmem:[%s2] sm:$0xff]
  %v43 = vld [vmem:[%s2 + $0x8] sm:$0xff]
  %v44 = vld [vmem:[%s2 + $0x10] sm:$0xff]
  %v45 = vld [vmem:[%s2 + $0x18] sm:$0xff]
  %v46 = vld [vmem:[%s3] sm:$0x1]
  %v48 = vperm.slane %v46, 0
  %vm50 = vcmask 130048
  %v52 = vsel %vm50, %v38, 0
  %v55 = vsel %vm50, %v39, 0
  %57 = vmatpush.msra.mxu0 0.0
  %58 = vmatpush.msra.mxu0 0.0
  %59 = vmatpush.msra.mxu0 0.0
  %60 = vmatpush.msra.mxu0 0.0
  %61 = vmatpush.msra.mxu0 0.0
  %62 = vmatpush.msra.mxu0 0.0
  %63 = vmatpush.msra.mxu0 0.0
  %64 = vmatpush.msra.mxu0 0.0
  %65 = vmatpush.msra.mxu0 0.0
  %66 = vmatpush.msra.mxu0 0.0
  %67 = vmatpush.msra.mxu0 0.0
  %68 = vmatpush.msra.mxu0 0.0
  %69 = vmatpush.msra.mxu0 0.0
  %70 = vmatpush.msra.mxu0 0.0
  %71 = vmatpush.msra.mxu0 %v41
  %72 = vmatpush.msra.mxu0 %v40
  %73 = vmatmul.f32.gmra.mxu0 %v52
  %v74 = vpop.f32.mrf.mxu0
  %v75 = vadd.f32 %v48, %v74
  %76 = vmatmul.f32.gmra.mxu0 %v55
  %v77 = vpop.f32.mrf.mxu0
  %v78 = vadd.f32 %v48, %v77
  %79 = vdwg.mxu0
  %vm80 = vcmask 261120
  %v82 = vsel %vm80, 0.0, 0
  %84 = vmatpush.msra.mxu0 0.0
  %85 = vmatpush.msra.mxu0 0.0
  %86 = vmatpush.msra.mxu0 0.0
  %87 = vmatpush.msra.mxu0 0.0
  %88 = vmatpush.msra.mxu0 0.0
  %89 = vmatpush.msra.mxu0 0.0
  %90 = vmatpush.msra.mxu0 0.0
  %91 = vmatpush.msra.mxu0 0.0
  %92 = vmatpush.msra.mxu0 0.0
  %93 = vmatpush.msra.mxu0 0.0
  %94 = vmatpush.msra.mxu0 0.0
  %95 = vmatpush.msra.mxu0 0.0
  %96 = vmatpush.msra.mxu0 %v45
  %97 = vmatpush.msra.mxu0 %v44
  %98 = vmatpush.msra.mxu0 %v43
  %99 = vmatpush.msra.mxu0 %v42
  %100 = vmatmul.f32.gmra.mxu0 %v82
  %v101 = vpop.f32.mrf.mxu0
  %v102 = vadd.f32 0.0, %v101
  %103 = vdwg.mxu0
  %v104 = vadd.f32 %v75, %v102
  %v105 = vxor.u32 %v104, 2147483648
  %v106 = vmul.f32 %v105, 1.442695
  %v107 = vpow.pop %v106
  %v108 = vadd.f32 %v107, 1.0
  %v109 = vrcp.pop %v108
  %v110 = vmul.f32 %v108, %v109
  %v111 = vsub.f32 1.0, %v110
  %v112 = vmul.f32 %v109, %v111
  %v113 = vadd.f32 %v109, %v112
  %vm114 = vweird.f32 %v108
  %vm115 = vweird.f32 %v109
  %vm116 = vmor %vm114, %vm115
  %v117 = vsel %vm116, %v109, %v113
  %v118 = vand.u32 2147483647, %v108
  %vm119 = vcmp.eq.f32.partialorder %v118, 8.507059e+37
  %v120 = vand.u32 %v108, 2147483648
  %v121 = vor.u32 1.1754944e-38, %v120
  %v122 = vsel %vm119, %v121, %v117
  %v123 = vmul.f32 1.0, %v122
  %v124 = vtanh.pop %v104
  %v125 = vmul.f32 %v123, 0.0
  %127 = vrot.lane.b32.xlu0 %v124, 64
  %v128 = vpop.permute.xlu0 %127
  %v130 = vmul.f32 %v123, %v128
  %132 = vrot.lane.b32.xlu0 %v130, 32
  %v133 = vpop.permute.xlu0 %132
  %v135 = vadd.f32 %v125, %v133
  %v136 = vtanh.pop %v135
  %138 = vrot.lane.b32.xlu0 %v136, 64
  %v139 = vpop.permute.xlu0 %138
  %v141 = vmul.f32 %v123, %v139
  %143 = vrot.lane.b32.xlu0 %v141, 32
  %v144 = vpop.permute.xlu0 %143
  %vm146 = vcmask 254976
  %147 = vst.msk [vmem:[#allocation2] sm:$0x3] %vm146, %v144
  %v148 = vsel %vm80, %v144, 0
  %150 = vmatpush.msra.mxu0 0.0
  %151 = vmatpush.msra.mxu0 0.0
  %152 = vmatpush.msra.mxu0 0.0
  %153 = vmatpush.msra.mxu0 0.0
  %154 = vmatpush.msra.mxu0 0.0
  %155 = vmatpush.msra.mxu0 0.0
  %156 = vmatpush.msra.mxu0 0.0
  %157 = vmatpush.msra.mxu0 0.0
  %158 = vmatpush.msra.mxu0 0.0
  %159 = vmatpush.msra.mxu0 0.0
  %160 = vmatpush.msra.mxu0 0.0
  %161 = vmatpush.msra.mxu0 0.0
  %162 = vmatpush.msra.mxu0 %v45
  %163 = vmatpush.msra.mxu0 %v44
  %164 = vmatpush.msra.mxu0 %v43
  %165 = vmatpush.msra.mxu0 %v42
  %166 = vmatmul.f32.gmra.mxu0 %v148
  %v167 = vpop.f32.mrf.mxu0
  %v168 = vadd.f32 0.0, %v167
  %169 = vdwg.mxu0
  %v171 = vrot.slane %v168, 6
  %v173 = vadd.f32 %v75, %v171
  %v174 = vxor.u32 %v173, 2147483648
  %v175 = vmul.f32 %v174, 1.442695
  %v176 = vpow.pop %v175
  %v177 = vadd.f32 %v176, 1.0
  %v178 = vrcp.pop %v177
  %v179 = vmul.f32 %v177, %v178
  %v180 = vsub.f32 1.0, %v179
  %v181 = vmul.f32 %v178, %v180
  %v182 = vadd.f32 %v178, %v181
  %vm183 = vweird.f32 %v177
  %vm184 = vweird.f32 %v178
  %vm185 = vmor %vm183, %vm184
  %v186 = vsel %vm185, %v178, %v182
  %v187 = vand.u32 2147483647, %v177
  %vm188 = vcmp.eq.f32.partialorder %v187, 8.507059e+37
  %v189 = vand.u32 %v177, 2147483648
  %v190 = vor.u32 1.1754944e-38, %v189
  %v191 = vsel %vm188, %v190, %v186
  %v192 = vmul.f32 1.0, %v191
  %v193 = vtanh.pop %v173
  %v195 = vrot.slane %v135, 6
  %v197 = vmul.f32 %v192, %v195
  %199 = vrot.lane.b32.xlu0 %v193, 64
  %v200 = vpop.permute.xlu0 %199
  %v202 = vmul.f32 %v192, %v200
  %204 = vrot.lane.b32.xlu0 %v202, 32
  %v205 = vpop.permute.xlu0 %204
  %v207 = vadd.f32 %v197, %v205
  %v208 = vtanh.pop %v207
  %210 = vrot.lane.b32.xlu0 %v208, 64
  %v211 = vpop.permute.xlu0 %210
  %v213 = vmul.f32 %v192, %v211
  %215 = vrot.lane.b32.xlu0 %v213, 32
  %v216 = vpop.permute.xlu0 %215
  %vm218 = vcmask 257026
  %219 = vst.msk [vmem:[#allocation2] sm:$0xc] %vm218, %v216
  %v220 = vrot.slane %v213, 2
  %221 = vrot.lane.b32.xlu0 %v220, 32
  %v222 = vpop.permute.xlu0 %221
  %v223 = vsel %vm80, %v222, 0
  %225 = vmatpush.msra.mxu0 0.0
  %226 = vmatpush.msra.mxu0 0.0
  %227 = vmatpush.msra.mxu0 0.0
  %228 = vmatpush.msra.mxu0 0.0
  %229 = vmatpush.msra.mxu0 0.0
  %230 = vmatpush.msra.mxu0 0.0
  %231 = vmatpush.msra.mxu0 0.0
  %232 = vmatpush.msra.mxu0 0.0
  %233 = vmatpush.msra.mxu0 0.0
  %234 = vmatpush.msra.mxu0 0.0
  %235 = vmatpush.msra.mxu0 0.0
  %236 = vmatpush.msra.mxu0 0.0
  %237 = vmatpush.msra.mxu0 %v45
  %238 = vmatpush.msra.mxu0 %v44
  %239 = vmatpush.msra.mxu0 %v43
  %240 = vmatpush.msra.mxu0 %v42
  %241 = vmatmul.f32.gmra.mxu0 %v223
  %v242 = vpop.f32.mrf.mxu0
  %v243 = vadd.f32 0.0, %v242
  %244 = vdwg.mxu0
  %v246 = vrot.slane %v243, 4
  %v248 = vadd.f32 %v75, %v246
  %v249 = vxor.u32 %v248, 2147483648
  %v250 = vmul.f32 %v249, 1.442695
  %v251 = vpow.pop %v250
  %v252 = vadd.f32 %v251, 1.0
  %v253 = vrcp.pop %v252
  %v254 = vmul.f32 %v252, %v253
  %v255 = vsub.f32 1.0, %v254
  %v256 = vmul.f32 %v253, %v255
  %v257 = vadd.f32 %v253, %v256
  %vm258 = vweird.f32 %v252
  %vm259 = vweird.f32 %v253
  %vm260 = vmor %vm258, %vm259
  %v261 = vsel %vm260, %v253, %v257
  %v262 = vand.u32 2147483647, %v252
  %vm263 = vcmp.eq.f32.partialorder %v262, 8.507059e+37
  %v264 = vand.u32 %v252, 2147483648
  %v265 = vor.u32 1.1754944e-38, %v264
  %v266 = vsel %vm263, %v265, %v261
  %v267 = vmul.f32 1.0, %v266
  %v268 = vtanh.pop %v248
  %v270 = vrot.slane %v207, 6
  %v272 = vmul.f32 %v267, %v270
  %274 = vrot.lane.b32.xlu0 %v268, 64
  %v275 = vpop.permute.xlu0 %274
  %v277 = vmul.f32 %v267, %v275
  %279 = vrot.lane.b32.xlu0 %v277, 32
  %v280 = vpop.permute.xlu0 %279
  %v282 = vadd.f32 %v272, %v280
  %v283 = vtanh.pop %v282
  %285 = vrot.lane.b32.xlu0 %v283, 64
  %v286 = vpop.permute.xlu0 %285
  %v288 = vmul.f32 %v267, %v286
  %290 = vrot.lane.b32.xlu0 %v288, 32
  %v291 = vpop.permute.xlu0 %290
  %vm293 = vcmask 259076
  %294 = vst.msk [vmem:[#allocation2] sm:$0x30] %vm293, %v291
  %v295 = vrot.slane %v288, 4
  %296 = vrot.lane.b32.xlu0 %v295, 32
  %v297 = vpop.permute.xlu0 %296
  %v298 = vsel %vm80, %v297, 0
  %300 = vmatpush.msra.mxu0 0.0
  %301 = vmatpush.msra.mxu0 0.0
  %302 = vmatpush.msra.mxu0 0.0
  %303 = vmatpush.msra.mxu0 0.0
  %304 = vmatpush.msra.mxu0 0.0
  %305 = vmatpush.msra.mxu0 0.0
  %306 = vmatpush.msra.mxu0 0.0
  %307 = vmatpush.msra.mxu0 0.0
  %308 = vmatpush.msra.mxu0 0.0
  %309 = vmatpush.msra.mxu0 0.0
  %310 = vmatpush.msra.mxu0 0.0
  %311 = vmatpush.msra.mxu0 0.0
  %312 = vmatpush.msra.mxu0 %v45
  %313 = vmatpush.msra.mxu0 %v44
  %314 = vmatpush.msra.mxu0 %v43
  %315 = vmatpush.msra.mxu0 %v42
  %316 = vmatmul.f32.gmra.mxu0 %v298
  %v317 = vpop.f32.mrf.mxu0
  %v318 = vadd.f32 0.0, %v317
  %319 = vdwg.mxu0
  %v321 = vrot.slane %v318, 2
  %v323 = vadd.f32 %v75, %v321
  %v324 = vxor.u32 %v323, 2147483648
  %v325 = vmul.f32 %v324, 1.442695
  %v326 = vpow.pop %v325
  %v327 = vadd.f32 %v326, 1.0
  %v328 = vrcp.pop %v327
  %v329 = vmul.f32 %v327, %v328
  %v330 = vsub.f32 1.0, %v329
  %v331 = vmul.f32 %v328, %v330
  %v332 = vadd.f32 %v328, %v331
  %vm333 = vweird.f32 %v327
  %vm334 = vweird.f32 %v328
  %vm335 = vmor %vm333, %vm334
  %v336 = vsel %vm335, %v328, %v332
  %v337 = vand.u32 2147483647, %v327
  %vm338 = vcmp.eq.f32.partialorder %v337, 8.507059e+37
  %v339 = vand.u32 %v327, 2147483648
  %v340 = vor.u32 1.1754944e-38, %v339
  %v341 = vsel %vm338, %v340, %v336
  %v342 = vmul.f32 1.0, %v341
  %v343 = vtanh.pop %v323
  %v345 = vrot.slane %v282, 6
  %v347 = vmul.f32 %v342, %v345
  %349 = vrot.lane.b32.xlu0 %v343, 64
  %v350 = vpop.permute.xlu0 %349
  %v352 = vmul.f32 %v342, %v350
  %354 = vrot.lane.b32.xlu0 %v352, 32
  %v355 = vpop.permute.xlu0 %354
  %v357 = vadd.f32 %v347, %v355
  %v358 = vtanh.pop %v357
  %360 = vrot.lane.b32.xlu0 %v358, 64
  %v361 = vpop.permute.xlu0 %360
  %v363 = vmul.f32 %v342, %v361
  %365 = vrot.lane.b32.xlu0 %v363, 32
  %v366 = vpop.permute.xlu0 %365
  %vm368 = vcmask 261126
  %369 = vst.msk [vmem:[#allocation2] sm:$0xc0] %vm368, %v366
  %v370 = vrot.slane %v363, 6
  %371 = vrot.lane.b32.xlu0 %v370, 32
  %v372 = vpop.permute.xlu0 %371
  %v373 = vsel %vm80, %v372, 0
  %375 = vmatpush.msra.mxu0 0.0
  %376 = vmatpush.msra.mxu0 0.0
  %377 = vmatpush.msra.mxu0 0.0
  %378 = vmatpush.msra.mxu0 0.0
  %379 = vmatpush.msra.mxu0 0.0
  %380 = vmatpush.msra.mxu0 0.0
  %381 = vmatpush.msra.mxu0 0.0
  %382 = vmatpush.msra.mxu0 0.0
  %383 = vmatpush.msra.mxu0 0.0
  %384 = vmatpush.msra.mxu0 0.0
  %385 = vmatpush.msra.mxu0 0.0
  %386 = vmatpush.msra.mxu0 0.0
  %387 = vmatpush.msra.mxu0 %v45
  %388 = vmatpush.msra.mxu0 %v44
  %389 = vmatpush.msra.mxu0 %v43
  %390 = vmatpush.msra.mxu0 %v42
  %391 = vmatmul.f32.gmra.mxu0 %v373
  %v392 = vpop.f32.mrf.mxu0
  %v393 = vadd.f32 0.0, %v392
  %394 = vdwg.mxu0
  %v395 = vadd.f32 %v78, %v393
  %v396 = vxor.u32 %v395, 2147483648
  %v397 = vmul.f32 %v396, 1.442695
  %v398 = vpow.pop %v397
  %v399 = vadd.f32 %v398, 1.0
  %v400 = vrcp.pop %v399
  %v401 = vmul.f32 %v399, %v400
  %v402 = vsub.f32 1.0, %v401
  %v403 = vmul.f32 %v400, %v402
  %v404 = vadd.f32 %v400, %v403
  %vm405 = vweird.f32 %v399
  %vm406 = vweird.f32 %v400
  %vm407 = vmor %vm405, %vm406
  %v408 = vsel %vm407, %v400, %v404
  %v409 = vand.u32 2147483647, %v399
  %vm410 = vcmp.eq.f32.partialorder %v409, 8.507059e+37
  %v411 = vand.u32 %v399, 2147483648
  %v412 = vor.u32 1.1754944e-38, %v411
  %v413 = vsel %vm410, %v412, %v408
  %v414 = vmul.f32 1.0, %v413
  %v415 = vtanh.pop %v395
  %v417 = vrot.slane %v357, 6
  %v419 = vmul.f32 %v414, %v417
  %421 = vrot.lane.b32.xlu0 %v415, 64
  %v422 = vpop.permute.xlu0 %421
  %v424 = vmul.f32 %v414, %v422
  %426 = vrot.lane.b32.xlu0 %v424, 32
  %v427 = vpop.permute.xlu0 %426
  %v429 = vadd.f32 %v419, %v427
  %v430 = vtanh.pop %v429
  %432 = vrot.lane.b32.xlu0 %v430, 64
  %v433 = vpop.permute.xlu0 %432
  %v435 = vmul.f32 %v414, %v433
  %437 = vrot.lane.b32.xlu0 %v435, 32
  %v438 = vpop.permute.xlu0 %437
  %440 = vst.msk [vmem:[#allocation2 + $0x8] sm:$0x3] %vm146, %v438
  %v441 = vsel %vm80, %v438, 0
  %443 = vmatpush.msra.mxu0 0.0
  %444 = vmatpush.msra.mxu0 0.0
  %445 = vmatpush.msra.mxu0 0.0
  %446 = vmatpush.msra.mxu0 0.0
  %447 = vmatpush.msra.mxu0 0.0
  %448 = vmatpush.msra.mxu0 0.0
  %449 = vmatpush.msra.mxu0 0.0
  %450 = vmatpush.msra.mxu0 0.0
  %451 = vmatpush.msra.mxu0 0.0
  %452 = vmatpush.msra.mxu0 0.0
  %453 = vmatpush.msra.mxu0 0.0
  %454 = vmatpush.msra.mxu0 0.0
  %455 = vmatpush.msra.mxu0 %v45
  %456 = vmatpush.msra.mxu0 %v44
  %457 = vmatpush.msra.mxu0 %v43
  %458 = vmatpush.msra.mxu0 %v42
  %459 = vmatmul.f32.gmra.mxu0 %v441
  %v460 = vpop.f32.mrf.mxu0
  %v461 = vadd.f32 0.0, %v460
  %462 = vdwg.mxu0
  %v464 = vrot.slane %v461, 6
  %v466 = vadd.f32 %v78, %v464
  %v467 = vxor.u32 %v466, 2147483648
  %v468 = vmul.f32 %v467, 1.442695
  %v469 = vpow.pop %v468
  %v470 = vadd.f32 %v469, 1.0
  %v471 = vrcp.pop %v470
  %v472 = vmul.f32 %v470, %v471
  %v473 = vsub.f32 1.0, %v472
  %v474 = vmul.f32 %v471, %v473
  %v475 = vadd.f32 %v471, %v474
  %vm476 = vweird.f32 %v470
  %vm477 = vweird.f32 %v471
  %vm478 = vmor %vm476, %vm477
  %v479 = vsel %vm478, %v471, %v475
  %v480 = vand.u32 2147483647, %v470
  %vm481 = vcmp.eq.f32.partialorder %v480, 8.507059e+37
  %v482 = vand.u32 %v470, 2147483648
  %v483 = vor.u32 1.1754944e-38, %v482
  %v484 = vsel %vm481, %v483, %v479
  %v485 = vmul.f32 1.0, %v484
  %v486 = vtanh.pop %v466
  %v488 = vrot.slane %v429, 6
  %v490 = vmul.f32 %v485, %v488
  %492 = vrot.lane.b32.xlu0 %v486, 64
  %v493 = vpop.permute.xlu0 %492
  %v495 = vmul.f32 %v485, %v493
  %497 = vrot.lane.b32.xlu0 %v495, 32
  %v498 = vpop.permute.xlu0 %497
  %v500 = vadd.f32 %v490, %v498
  %v501 = vtanh.pop %v500
  %503 = vrot.lane.b32.xlu0 %v501, 64
  %v504 = vpop.permute.xlu0 %503
  %v506 = vmul.f32 %v485, %v504
  %508 = vrot.lane.b32.xlu0 %v506, 32
  %v509 = vpop.permute.xlu0 %508
  %511 = vst.msk [vmem:[#allocation2 + $0x8] sm:$0xc] %vm218, %v509
  %v512 = vrot.slane %v506, 2
  %513 = vrot.lane.b32.xlu0 %v512, 32
  %v514 = vpop.permute.xlu0 %513
  %v515 = vsel %vm80, %v514, 0
  %517 = vmatpush.msra.mxu0 0.0
  %518 = vmatpush.msra.mxu0 0.0
  %519 = vmatpush.msra.mxu0 0.0
  %520 = vmatpush.msra.mxu0 0.0
  %521 = vmatpush.msra.mxu0 0.0
  %522 = vmatpush.msra.mxu0 0.0
  %523 = vmatpush.msra.mxu0 0.0
  %524 = vmatpush.msra.mxu0 0.0
  %525 = vmatpush.msra.mxu0 0.0
  %526 = vmatpush.msra.mxu0 0.0
  %527 = vmatpush.msra.mxu0 0.0
  %528 = vmatpush.msra.mxu0 0.0
  %529 = vmatpush.msra.mxu0 %v45
  %530 = vmatpush.msra.mxu0 %v44
  %531 = vmatpush.msra.mxu0 %v43
  %532 = vmatpush.msra.mxu0 %v42
  %533 = vmatmul.f32.gmra.mxu0 %v515
  %v534 = vpop.f32.mrf.mxu0
  %v535 = vadd.f32 0.0, %v534
  %536 = vdwg.mxu0
  %v538 = vrot.slane %v535, 4
  %v540 = vadd.f32 %v78, %v538
  %v541 = vxor.u32 %v540, 2147483648
  %v542 = vmul.f32 %v541, 1.442695
  %v543 = vpow.pop %v542
  %v544 = vadd.f32 %v543, 1.0
  %v545 = vrcp.pop %v544
  %v546 = vmul.f32 %v544, %v545
  %v547 = vsub.f32 1.0, %v546
  %v548 = vmul.f32 %v545, %v547
  %v549 = vadd.f32 %v545, %v548
  %vm550 = vweird.f32 %v544
  %vm551 = vweird.f32 %v545
  %vm552 = vmor %vm550, %vm551
  %v553 = vsel %vm552, %v545, %v549
  %v554 = vand.u32 2147483647, %v544
  %vm555 = vcmp.eq.f32.partialorder %v554, 8.507059e+37
  %v556 = vand.u32 %v544, 2147483648
  %v557 = vor.u32 1.1754944e-38, %v556
  %v558 = vsel %vm555, %v557, %v553
  %v559 = vmul.f32 1.0, %v558
  %v560 = vtanh.pop %v540
  %v562 = vrot.slane %v500, 6
  %v564 = vmul.f32 %v559, %v562
  %566 = vrot.lane.b32.xlu0 %v560, 64
  %v567 = vpop.permute.xlu0 %566
  %v569 = vmul.f32 %v559, %v567
  %571 = vrot.lane.b32.xlu0 %v569, 32
  %v572 = vpop.permute.xlu0 %571
  %v574 = vadd.f32 %v564, %v572
  %v575 = vtanh.pop %v574
  %577 = vrot.lane.b32.xlu0 %v575, 64
  %v578 = vpop.permute.xlu0 %577
  %v580 = vmul.f32 %v559, %v578
  %582 = vrot.lane.b32.xlu0 %v580, 32
  %v583 = vpop.permute.xlu0 %582
  %585 = vst.msk [vmem:[#allocation2 + $0x8] sm:$0x30] %vm293, %v583
  %v586 = vrot.slane %v580, 4
  %587 = vrot.lane.b32.xlu0 %v586, 32
  %v588 = vpop.permute.xlu0 %587
  %v589 = vsel %vm80, %v588, 0
  %591 = vmatpush.msra.mxu0 0.0
  %592 = vmatpush.msra.mxu0 0.0
  %593 = vmatpush.msra.mxu0 0.0
  %594 = vmatpush.msra.mxu0 0.0
  %595 = vmatpush.msra.mxu0 0.0
  %596 = vmatpush.msra.mxu0 0.0
  %597 = vmatpush.msra.mxu0 0.0
  %598 = vmatpush.msra.mxu0 0.0
  %599 = vmatpush.msra.mxu0 0.0
  %600 = vmatpush.msra.mxu0 0.0
  %601 = vmatpush.msra.mxu0 0.0
  %602 = vmatpush.msra.mxu0 0.0
  %603 = vmatpush.msra.mxu0 %v45
  %604 = vmatpush.msra.mxu0 %v44
  %605 = vmatpush.msra.mxu0 %v43
  %606 = vmatpush.msra.mxu0 %v42
  %607 = vmatmul.f32.gmra.mxu0 %v589
  %v608 = vpop.f32.mrf.mxu0
  %v609 = vadd.f32 0.0, %v608
  %610 = vdwg.mxu0
  %v612 = vrot.slane %v609, 2
  %v614 = vadd.f32 %v78, %v612
  %v615 = vxor.u32 %v614, 2147483648
  %v616 = vmul.f32 %v615, 1.442695
  %v617 = vpow.pop %v616
  %v618 = vadd.f32 %v617, 1.0
  %v619 = vrcp.pop %v618
  %v620 = vmul.f32 %v618, %v619
  %v621 = vsub.f32 1.0, %v620
  %v622 = vmul.f32 %v619, %v621
  %v623 = vadd.f32 %v619, %v622
  %vm624 = vweird.f32 %v618
  %vm625 = vweird.f32 %v619
  %vm626 = vmor %vm624, %vm625
  %v627 = vsel %vm626, %v619, %v623
  %v628 = vand.u32 2147483647, %v618
  %vm629 = vcmp.eq.f32.partialorder %v628, 8.507059e+37
  %v630 = vand.u32 %v618, 2147483648
  %v631 = vor.u32 1.1754944e-38, %v630
  %v632 = vsel %vm629, %v631, %v627
  %v633 = vmul.f32 1.0, %v632
  %v634 = vtanh.pop %v614
  %v636 = vrot.slane %v574, 6
  %v638 = vmul.f32 %v633, %v636
  %640 = vrot.lane.b32.xlu0 %v634, 64
  %v641 = vpop.permute.xlu0 %640
  %v643 = vmul.f32 %v633, %v641
  %645 = vrot.lane.b32.xlu0 %v643, 32
  %v646 = vpop.permute.xlu0 %645
  %v648 = vadd.f32 %v638, %v646
  %v649 = vtanh.pop %v648
  %651 = vrot.lane.b32.xlu0 %v649, 64
  %v652 = vpop.permute.xlu0 %651
  %v654 = vmul.f32 %v633, %v652
  %656 = vrot.lane.b32.xlu0 %v654, 32
  %v657 = vpop.permute.xlu0 %656
  %659 = vst.msk [vmem:[#allocation2 + $0x8] sm:$0xc0] %vm368, %v657
  %v660 = vld [vmem:[#allocation2] sm:$0xff]
  %v661 = vld [vmem:[#allocation2 + $0x8] sm:$0xff]
  %v662 = vld [vmem:[%s4] sm:$0xff]
  %v663 = vld [vmem:[%s4 + $0x8] sm:$0xff]
  %v664 = vld [vmem:[%s4 + $0x10] sm:$0xff]
  %v665 = vld [vmem:[%s4 + $0x18] sm:$0xff]
  %v666 = vld [vmem:[%s5] sm:$0xff]
  %v667 = vld [vmem:[%s5 + $0x8] sm:$0xff]
  %v668 = vld [vmem:[%s5 + $0x10] sm:$0xff]
  %v669 = vld [vmem:[%s5 + $0x18] sm:$0xff]
  %v670 = vld [vmem:[%s6] sm:$0x1]
  %v672 = vperm.slane %v670, 0
  %v675 = vsel %vm80, %v660, 0
  %v678 = vsel %vm80, %v661, 0
  %680 = vmatpush.msra.mxu0 0.0
  %681 = vmatpush.msra.mxu0 0.0
  %682 = vmatpush.msra.mxu0 0.0
  %683 = vmatpush.msra.mxu0 0.0
  %684 = vmatpush.msra.mxu0 0.0
  %685 = vmatpush.msra.mxu0 0.0
  %686 = vmatpush.msra.mxu0 0.0
  %687 = vmatpush.msra.mxu0 0.0
  %688 = vmatpush.msra.mxu0 0.0
  %689 = vmatpush.msra.mxu0 0.0
  %690 = vmatpush.msra.mxu0 0.0
  %691 = vmatpush.msra.mxu0 0.0
  %692 = vmatpush.msra.mxu0 %v665
  %693 = vmatpush.msra.mxu0 %v664
  %694 = vmatpush.msra.mxu0 %v663
  %695 = vmatpush.msra.mxu0 %v662
  %696 = vmatmul.f32.gmra.mxu0 %v675
  %v697 = vpop.f32.mrf.mxu0
  %v698 = vadd.f32 %v672, %v697
  %699 = vmatmul.f32.gmra.mxu0 %v678
  %v700 = vpop.f32.mrf.mxu0
  %v701 = vadd.f32 %v672, %v700
  %702 = vdwg.mxu0
  %703 = vmatpush.msra.mxu0 0.0
  %704 = vmatpush.msra.mxu0 0.0
  %705 = vmatpush.msra.mxu0 0.0
  %706 = vmatpush.msra.mxu0 0.0
  %707 = vmatpush.msra.mxu0 0.0
  %708 = vmatpush.msra.mxu0 0.0
  %709 = vmatpush.msra.mxu0 0.0
  %710 = vmatpush.msra.mxu0 0.0
  %711 = vmatpush.msra.mxu0 0.0
  %712 = vmatpush.msra.mxu0 0.0
  %713 = vmatpush.msra.mxu0 0.0
  %714 = vmatpush.msra.mxu0 0.0
  %715 = vmatpush.msra.mxu0 %v669
  %716 = vmatpush.msra.mxu0 %v668
  %717 = vmatpush.msra.mxu0 %v667
  %718 = vmatpush.msra.mxu0 %v666
  %719 = vmatmul.f32.gmra.mxu0 %v82
  %v720 = vpop.f32.mrf.mxu0
  %v721 = vadd.f32 0.0, %v720
  %722 = vdwg.mxu0
  %v723 = vadd.f32 %v698, %v721
  %v724 = vxor.u32 %v723, 2147483648
  %v725 = vmul.f32 %v724, 1.442695
  %v726 = vpow.pop %v725
  %v727 = vadd.f32 %v726, 1.0
  %v728 = vrcp.pop %v727
  %v729 = vmul.f32 %v727, %v728
  %v730 = vsub.f32 1.0, %v729
  %v731 = vmul.f32 %v728, %v730
  %v732 = vadd.f32 %v728, %v731
  %vm733 = vweird.f32 %v727
  %vm734 = vweird.f32 %v728
  %vm735 = vmor %vm733, %vm734
  %v736 = vsel %vm735, %v728, %v732
  %v737 = vand.u32 2147483647, %v727
  %vm738 = vcmp.eq.f32.partialorder %v737, 8.507059e+37
  %v739 = vand.u32 %v727, 2147483648
  %v740 = vor.u32 1.1754944e-38, %v739
  %v741 = vsel %vm738, %v740, %v736
  %v742 = vmul.f32 1.0, %v741
  %v743 = vtanh.pop %v723
  %v744 = vmul.f32 %v742, 0.0
  %746 = vrot.lane.b32.xlu0 %v743, 64
  %v747 = vpop.permute.xlu0 %746
  %v749 = vmul.f32 %v742, %v747
  %751 = vrot.lane.b32.xlu0 %v749, 32
  %v752 = vpop.permute.xlu0 %751
  %v754 = vadd.f32 %v744, %v752
  %v755 = vtanh.pop %v754
  %757 = vrot.lane.b32.xlu0 %v755, 64
  %v758 = vpop.permute.xlu0 %757
  %v760 = vmul.f32 %v742, %v758
  %762 = vrot.lane.b32.xlu0 %v760, 32
  %v763 = vpop.permute.xlu0 %762
  %765 = vst.msk [vmem:[#allocation2] sm:$0x3] %vm146, %v763
  %v766 = vsel %vm80, %v763, 0
  %768 = vmatpush.msra.mxu0 0.0
  %769 = vmatpush.msra.mxu0 0.0
  %770 = vmatpush.msra.mxu0 0.0
  %771 = vmatpush.msra.mxu0 0.0
  %772 = vmatpush.msra.mxu0 0.0
  %773 = vmatpush.msra.mxu0 0.0
  %774 = vmatpush.msra.mxu0 0.0
  %775 = vmatpush.msra.mxu0 0.0
  %776 = vmatpush.msra.mxu0 0.0
  %777 = vmatpush.msra.mxu0 0.0
  %778 = vmatpush.msra.mxu0 0.0
  %779 = vmatpush.msra.mxu0 0.0
  %780 = vmatpush.msra.mxu0 %v669
  %781 = vmatpush.msra.mxu0 %v668
  %782 = vmatpush.msra.mxu0 %v667
  %783 = vmatpush.msra.mxu0 %v666
  %784 = vmatmul.f32.gmra.mxu0 %v766
  %v785 = vpop.f32.mrf.mxu0
  %v786 = vadd.f32 0.0, %v785
  %787 = vdwg.mxu0
  %v789 = vrot.slane %v786, 6
  %v791 = vadd.f32 %v698, %v789
  %v792 = vxor.u32 %v791, 2147483648
  %v793 = vmul.f32 %v792, 1.442695
  %v794 = vpow.pop %v793
  %v795 = vadd.f32 %v794, 1.0
  %v796 = vrcp.pop %v795
  %v797 = vmul.f32 %v795, %v796
  %v798 = vsub.f32 1.0, %v797
  %v799 = vmul.f32 %v796, %v798
  %v800 = vadd.f32 %v796, %v799
  %vm801 = vweird.f32 %v795
  %vm802 = vweird.f32 %v796
  %vm803 = vmor %vm801, %vm802
  %v804 = vsel %vm803, %v796, %v800
  %v805 = vand.u32 2147483647, %v795
  %vm806 = vcmp.eq.f32.partialorder %v805, 8.507059e+37
  %v807 = vand.u32 %v795, 2147483648
  %v808 = vor.u32 1.1754944e-38, %v807
  %v809 = vsel %vm806, %v808, %v804
  %v810 = vmul.f32 1.0, %v809
  %v811 = vtanh.pop %v791
  %v813 = vrot.slane %v754, 6
  %v815 = vmul.f32 %v810, %v813
  %817 = vrot.lane.b32.xlu0 %v811, 64
  %v818 = vpop.permute.xlu0 %817
  %v820 = vmul.f32 %v810, %v818
  %822 = vrot.lane.b32.xlu0 %v820, 32
  %v823 = vpop.permute.xlu0 %822
  %v825 = vadd.f32 %v815, %v823
  %v826 = vtanh.pop %v825
  %828 = vrot.lane.b32.xlu0 %v826, 64
  %v829 = vpop.permute.xlu0 %828
  %v831 = vmul.f32 %v810, %v829
  %833 = vrot.lane.b32.xlu0 %v831, 32
  %v834 = vpop.permute.xlu0 %833
  %836 = vst.msk [vmem:[#allocation2] sm:$0xc] %vm218, %v834
  %v837 = vrot.slane %v831, 2
  %838 = vrot.lane.b32.xlu0 %v837, 32
  %v839 = vpop.permute.xlu0 %838
  %v840 = vsel %vm80, %v839, 0
  %842 = vmatpush.msra.mxu0 0.0
  %843 = vmatpush.msra.mxu0 0.0
  %844 = vmatpush.msra.mxu0 0.0
  %845 = vmatpush.msra.mxu0 0.0
  %846 = vmatpush.msra.mxu0 0.0
  %847 = vmatpush.msra.mxu0 0.0
  %848 = vmatpush.msra.mxu0 0.0
  %849 = vmatpush.msra.mxu0 0.0
  %850 = vmatpush.msra.mxu0 0.0
  %851 = vmatpush.msra.mxu0 0.0
  %852 = vmatpush.msra.mxu0 0.0
  %853 = vmatpush.msra.mxu0 0.0
  %854 = vmatpush.msra.mxu0 %v669
  %855 = vmatpush.msra.mxu0 %v668
  %856 = vmatpush.msra.mxu0 %v667
  %857 = vmatpush.msra.mxu0 %v666
  %858 = vmatmul.f32.gmra.mxu0 %v840
  %v859 = vpop.f32.mrf.mxu0
  %v860 = vadd.f32 0.0, %v859
  %861 = vdwg.mxu0
  %v863 = vrot.slane %v860, 4
  %v865 = vadd.f32 %v698, %v863
  %v866 = vxor.u32 %v865, 2147483648
  %v867 = vmul.f32 %v866, 1.442695
  %v868 = vpow.pop %v867
  %v869 = vadd.f32 %v868, 1.0
  %v870 = vrcp.pop %v869
  %v871 = vmul.f32 %v869, %v870
  %v872 = vsub.f32 1.0, %v871
  %v873 = vmul.f32 %v870, %v872
  %v874 = vadd.f32 %v870, %v873
  %vm875 = vweird.f32 %v869
  %vm876 = vweird.f32 %v870
  %vm877 = vmor %vm875, %vm876
  %v878 = vsel %vm877, %v870, %v874
  %v879 = vand.u32 2147483647, %v869
  %vm880 = vcmp.eq.f32.partialorder %v879, 8.507059e+37
  %v881 = vand.u32 %v869, 2147483648
  %v882 = vor.u32 1.1754944e-38, %v881
  %v883 = vsel %vm880, %v882, %v878
  %v884 = vmul.f32 1.0, %v883
  %v885 = vtanh.pop %v865
  %v887 = vrot.slane %v825, 6
  %v889 = vmul.f32 %v884, %v887
  %891 = vrot.lane.b32.xlu0 %v885, 64
  %v892 = vpop.permute.xlu0 %891
  %v894 = vmul.f32 %v884, %v892
  %896 = vrot.lane.b32.xlu0 %v894, 32
  %v897 = vpop.permute.xlu0 %896
  %v899 = vadd.f32 %v889, %v897
  %v900 = vtanh.pop %v899
  %902 = vrot.lane.b32.xlu0 %v900, 64
  %v903 = vpop.permute.xlu0 %902
  %v905 = vmul.f32 %v884, %v903
  %907 = vrot.lane.b32.xlu0 %v905, 32
  %v908 = vpop.permute.xlu0 %907
  %910 = vst.msk [vmem:[#allocation2] sm:$0x30] %vm293, %v908
  %v911 = vrot.slane %v905, 4
  %912 = vrot.lane.b32.xlu0 %v911, 32
  %v913 = vpop.permute.xlu0 %912
  %v914 = vsel %vm80, %v913, 0
  %916 = vmatpush.msra.mxu0 0.0
  %917 = vmatpush.msra.mxu0 0.0
  %918 = vmatpush.msra.mxu0 0.0
  %919 = vmatpush.msra.mxu0 0.0
  %920 = vmatpush.msra.mxu0 0.0
  %921 = vmatpush.msra.mxu0 0.0
  %922 = vmatpush.msra.mxu0 0.0
  %923 = vmatpush.msra.mxu0 0.0
  %924 = vmatpush.msra.mxu0 0.0
  %925 = vmatpush.msra.mxu0 0.0
  %926 = vmatpush.msra.mxu0 0.0
  %927 = vmatpush.msra.mxu0 0.0
  %928 = vmatpush.msra.mxu0 %v669
  %929 = vmatpush.msra.mxu0 %v668
  %930 = vmatpush.msra.mxu0 %v667
  %931 = vmatpush.msra.mxu0 %v666
  %932 = vmatmul.f32.gmra.mxu0 %v914
  %v933 = vpop.f32.mrf.mxu0
  %v934 = vadd.f32 0.0, %v933
  %935 = vdwg.mxu0
  %v937 = vrot.slane %v934, 2
  %v939 = vadd.f32 %v698, %v937
  %v940 = vxor.u32 %v939, 2147483648
  %v941 = vmul.f32 %v940, 1.442695
  %v942 = vpow.pop %v941
  %v943 = vadd.f32 %v942, 1.0
  %v944 = vrcp.pop %v943
  %v945 = vmul.f32 %v943, %v944
  %v946 = vsub.f32 1.0, %v945
  %v947 = vmul.f32 %v944, %v946
  %v948 = vadd.f32 %v944, %v947
  %vm949 = vweird.f32 %v943
  %vm950 = vweird.f32 %v944
  %vm951 = vmor %vm949, %vm950
  %v952 = vsel %vm951, %v944, %v948
  %v953 = vand.u32 2147483647, %v943
  %vm954 = vcmp.eq.f32.partialorder %v953, 8.507059e+37
  %v955 = vand.u32 %v943, 2147483648
  %v956 = vor.u32 1.1754944e-38, %v955
  %v957 = vsel %vm954, %v956, %v952
  %v958 = vmul.f32 1.0, %v957
  %v959 = vtanh.pop %v939
  %v961 = vrot.slane %v899, 6
  %v963 = vmul.f32 %v958, %v961
  %965 = vrot.lane.b32.xlu0 %v959, 64
  %v966 = vpop.permute.xlu0 %965
  %v968 = vmul.f32 %v958, %v966
  %970 = vrot.lane.b32.xlu0 %v968, 32
  %v971 = vpop.permute.xlu0 %970
  %v973 = vadd.f32 %v963, %v971
  %v974 = vtanh.pop %v973
  %976 = vrot.lane.b32.xlu0 %v974, 64
  %v977 = vpop.permute.xlu0 %976
  %v979 = vmul.f32 %v958, %v977
  %981 = vrot.lane.b32.xlu0 %v979, 32
  %v982 = vpop.permute.xlu0 %981
  %984 = vst.msk [vmem:[#allocation2] sm:$0xc0] %vm368, %v982
  %v985 = vrot.slane %v979, 6
  %986 = vrot.lane.b32.xlu0 %v985, 32
  %v987 = vpop.permute.xlu0 %986
  %v988 = vsel %vm80, %v987, 0
  %990 = vmatpush.msra.mxu0 0.0
  %991 = vmatpush.msra.mxu0 0.0
  %992 = vmatpush.msra.mxu0 0.0
  %993 = vmatpush.msra.mxu0 0.0
  %994 = vmatpush.msra.mxu0 0.0
  %995 = vmatpush.msra.mxu0 0.0
  %996 = vmatpush.msra.mxu0 0.0
  %997 = vmatpush.msra.mxu0 0.0
  %998 = vmatpush.msra.mxu0 0.0
  %999 = vmatpush.msra.mxu0 0.0
  %1000 = vmatpush.msra.mxu0 0.0
  %1001 = vmatpush.msra.mxu0 0.0
  %1002 = vmatpush.msra.mxu0 %v669
  %1003 = vmatpush.msra.mxu0 %v668
  %1004 = vmatpush.msra.mxu0 %v667
  %1005 = vmatpush.msra.mxu0 %v666
  %1006 = vmatmul.f32.gmra.mxu0 %v988
  %v1007 = vpop.f32.mrf.mxu0
  %v1008 = vadd.f32 0.0, %v1007
  %1009 = vdwg.mxu0
  %v1010 = vadd.f32 %v701, %v1008
  %v1011 = vxor.u32 %v1010, 2147483648
  %v1012 = vmul.f32 %v1011, 1.442695
  %v1013 = vpow.pop %v1012
  %v1014 = vadd.f32 %v1013, 1.0
  %v1015 = vrcp.pop %v1014
  %v1016 = vmul.f32 %v1014, %v1015
  %v1017 = vsub.f32 1.0, %v1016
  %v1018 = vmul.f32 %v1015, %v1017
  %v1019 = vadd.f32 %v1015, %v1018
  %vm1020 = vweird.f32 %v1014
  %vm1021 = vweird.f32 %v1015
  %vm1022 = vmor %vm1020, %vm1021
  %v1023 = vsel %vm1022, %v1015, %v1019
  %v1024 = vand.u32 2147483647, %v1014
  %vm1025 = vcmp.eq.f32.partialorder %v1024, 8.507059e+37
  %v1026 = vand.u32 %v1014, 2147483648
  %v1027 = vor.u32 1.1754944e-38, %v1026
  %v1028 = vsel %vm1025, %v1027, %v1023
  %v1029 = vmul.f32 1.0, %v1028
  %v1030 = vtanh.pop %v1010
  %v1032 = vrot.slane %v973, 6
  %v1034 = vmul.f32 %v1029, %v1032
  %1036 = vrot.lane.b32.xlu0 %v1030, 64
  %v1037 = vpop.permute.xlu0 %1036
  %v1039 = vmul.f32 %v1029, %v1037
  %1041 = vrot.lane.b32.xlu0 %v1039, 32
  %v1042 = vpop.permute.xlu0 %1041
  %v1044 = vadd.f32 %v1034, %v1042
  %v1045 = vtanh.pop %v1044
  %1047 = vrot.lane.b32.xlu0 %v1045, 64
  %v1048 = vpop.permute.xlu0 %1047
  %v1050 = vmul.f32 %v1029, %v1048
  %1052 = vrot.lane.b32.xlu0 %v1050, 32
  %v1053 = vpop.permute.xlu0 %1052
  %1055 = vst.msk [vmem:[#allocation2 + $0x8] sm:$0x3] %vm146, %v1053
  %v1056 = vsel %vm80, %v1053, 0
  %1058 = vmatpush.msra.mxu0 0.0
  %1059 = vmatpush.msra.mxu0 0.0
  %1060 = vmatpush.msra.mxu0 0.0
  %1061 = vmatpush.msra.mxu0 0.0
  %1062 = vmatpush.msra.mxu0 0.0
  %1063 = vmatpush.msra.mxu0 0.0
  %1064 = vmatpush.msra.mxu0 0.0
  %1065 = vmatpush.msra.mxu0 0.0
  %1066 = vmatpush.msra.mxu0 0.0
  %1067 = vmatpush.msra.mxu0 0.0
  %1068 = vmatpush.msra.mxu0 0.0
  %1069 = vmatpush.msra.mxu0 0.0
  %1070 = vmatpush.msra.mxu0 %v669
  %1071 = vmatpush.msra.mxu0 %v668
  %1072 = vmatpush.msra.mxu0 %v667
  %1073 = vmatpush.msra.mxu0 %v666
  %1074 = vmatmul.f32.gmra.mxu0 %v1056
  %v1075 = vpop.f32.mrf.mxu0
  %v1076 = vadd.f32 0.0, %v1075
  %1077 = vdwg.mxu0
  %v1079 = vrot.slane %v1076, 6
  %v1081 = vadd.f32 %v701, %v1079
  %v1082 = vxor.u32 %v1081, 2147483648
  %v1083 = vmul.f32 %v1082, 1.442695
  %v1084 = vpow.pop %v1083
  %v1085 = vadd.f32 %v1084, 1.0
  %v1086 = vrcp.pop %v1085
  %v1087 = vmul.f32 %v1085, %v1086
  %v1088 = vsub.f32 1.0, %v1087
  %v1089 = vmul.f32 %v1086, %v1088
  %v1090 = vadd.f32 %v1086, %v1089
  %vm1091 = vweird.f32 %v1085
  %vm1092 = vweird.f32 %v1086
  %vm1093 = vmor %vm1091, %vm1092
  %v1094 = vsel %vm1093, %v1086, %v1090
  %v1095 = vand.u32 2147483647, %v1085
  %vm1096 = vcmp.eq.f32.partialorder %v1095, 8.507059e+37
  %v1097 = vand.u32 %v1085, 2147483648
  %v1098 = vor.u32 1.1754944e-38, %v1097
  %v1099 = vsel %vm1096, %v1098, %v1094
  %v1100 = vmul.f32 1.0, %v1099
  %v1101 = vtanh.pop %v1081
  %v1103 = vrot.slane %v1044, 6
  %v1105 = vmul.f32 %v1100, %v1103
  %1107 = vrot.lane.b32.xlu0 %v1101, 64
  %v1108 = vpop.permute.xlu0 %1107
  %v1110 = vmul.f32 %v1100, %v1108
  %1112 = vrot.lane.b32.xlu0 %v1110, 32
  %v1113 = vpop.permute.xlu0 %1112
  %v1115 = vadd.f32 %v1105, %v1113
  %v1116 = vtanh.pop %v1115
  %1118 = vrot.lane.b32.xlu0 %v1116, 64
  %v1119 = vpop.permute.xlu0 %1118
  %v1121 = vmul.f32 %v1100, %v1119
  %1123 = vrot.lane.b32.xlu0 %v1121, 32
  %v1124 = vpop.permute.xlu0 %1123
  %1126 = vst.msk [vmem:[#allocation2 + $0x8] sm:$0xc] %vm218, %v1124
  %v1127 = vrot.slane %v1121, 2
  %1128 = vrot.lane.b32.xlu0 %v1127, 32
  %v1129 = vpop.permute.xlu0 %1128
  %v1130 = vsel %vm80, %v1129, 0
  %1132 = vmatpush.msra.mxu0 0.0
  %1133 = vmatpush.msra.mxu0 0.0
  %1134 = vmatpush.msra.mxu0 0.0
  %1135 = vmatpush.msra.mxu0 0.0
  %1136 = vmatpush.msra.mxu0 0.0
  %1137 = vmatpush.msra.mxu0 0.0
  %1138 = vmatpush.msra.mxu0 0.0
  %1139 = vmatpush.msra.mxu0 0.0
  %1140 = vmatpush.msra.mxu0 0.0
  %1141 = vmatpush.msra.mxu0 0.0
  %1142 = vmatpush.msra.mxu0 0.0
  %1143 = vmatpush.msra.mxu0 0.0
  %1144 = vmatpush.msra.mxu0 %v669
  %1145 = vmatpush.msra.mxu0 %v668
  %1146 = vmatpush.msra.mxu0 %v667
  %1147 = vmatpush.msra.mxu0 %v666
  %1148 = vmatmul.f32.gmra.mxu0 %v1130
  %v1149 = vpop.f32.mrf.mxu0
  %v1150 = vadd.f32 0.0, %v1149
  %1151 = vdwg.mxu0
  %v1153 = vrot.slane %v1150, 4
  %v1155 = vadd.f32 %v701, %v1153
  %v1156 = vxor.u32 %v1155, 2147483648
  %v1157 = vmul.f32 %v1156, 1.442695
  %v1158 = vpow.pop %v1157
  %v1159 = vadd.f32 %v1158, 1.0
  %v1160 = vrcp.pop %v1159
  %v1161 = vmul.f32 %v1159, %v1160
  %v1162 = vsub.f32 1.0, %v1161
  %v1163 = vmul.f32 %v1160, %v1162
  %v1164 = vadd.f32 %v1160, %v1163
  %vm1165 = vweird.f32 %v1159
  %vm1166 = vweird.f32 %v1160
  %vm1167 = vmor %vm1165, %vm1166
  %v1168 = vsel %vm1167, %v1160, %v1164
  %v1169 = vand.u32 2147483647, %v1159
  %vm1170 = vcmp.eq.f32.partialorder %v1169, 8.507059e+37
  %v1171 = vand.u32 %v1159, 2147483648
  %v1172 = vor.u32 1.1754944e-38, %v1171
  %v1173 = vsel %vm1170, %v1172, %v1168
  %v1174 = vmul.f32 1.0, %v1173
  %v1175 = vtanh.pop %v1155
  %v1177 = vrot.slane %v1115, 6
  %v1179 = vmul.f32 %v1174, %v1177
  %1181 = vrot.lane.b32.xlu0 %v1175, 64
  %v1182 = vpop.permute.xlu0 %1181
  %v1184 = vmul.f32 %v1174, %v1182
  %1186 = vrot.lane.b32.xlu0 %v1184, 32
  %v1187 = vpop.permute.xlu0 %1186
  %v1189 = vadd.f32 %v1179, %v1187
  %v1190 = vtanh.pop %v1189
  %1192 = vrot.lane.b32.xlu0 %v1190, 64
  %v1193 = vpop.permute.xlu0 %1192
  %v1195 = vmul.f32 %v1174, %v1193
  %1197 = vrot.lane.b32.xlu0 %v1195, 32
  %v1198 = vpop.permute.xlu0 %1197
  %1200 = vst.msk [vmem:[#allocation2 + $0x8] sm:$0x30] %vm293, %v1198
  %v1201 = vrot.slane %v1195, 4
  %1202 = vrot.lane.b32.xlu0 %v1201, 32
  %v1203 = vpop.permute.xlu0 %1202
  %v1204 = vsel %vm80, %v1203, 0
  %1206 = vmatpush.msra.mxu0 0.0
  %1207 = vmatpush.msra.mxu0 0.0
  %1208 = vmatpush.msra.mxu0 0.0
  %1209 = vmatpush.msra.mxu0 0.0
  %1210 = vmatpush.msra.mxu0 0.0
  %1211 = vmatpush.msra.mxu0 0.0
  %1212 = vmatpush.msra.mxu0 0.0
  %1213 = vmatpush.msra.mxu0 0.0
  %1214 = vmatpush.msra.mxu0 0.0
  %1215 = vmatpush.msra.mxu0 0.0
  %1216 = vmatpush.msra.mxu0 0.0
  %1217 = vmatpush.msra.mxu0 0.0
  %1218 = vmatpush.msra.mxu0 %v669
  %1219 = vmatpush.msra.mxu0 %v668
  %1220 = vmatpush.msra.mxu0 %v667
  %1221 = vmatpush.msra.mxu0 %v666
  %1222 = vmatmul.f32.gmra.mxu0 %v1204
  %v1223 = vpop.f32.mrf.mxu0
  %v1224 = vadd.f32 0.0, %v1223
  %1225 = vdwg.mxu0
  %v1227 = vrot.slane %v1224, 2
  %v1229 = vadd.f32 %v701, %v1227
  %v1230 = vxor.u32 %v1229, 2147483648
  %v1231 = vmul.f32 %v1230, 1.442695
  %v1232 = vpow.pop %v1231
  %v1233 = vadd.f32 %v1232, 1.0
  %v1234 = vrcp.pop %v1233
  %v1235 = vmul.f32 %v1233, %v1234
  %v1236 = vsub.f32 1.0, %v1235
  %v1237 = vmul.f32 %v1234, %v1236
  %v1238 = vadd.f32 %v1234, %v1237
  %vm1239 = vweird.f32 %v1233
  %vm1240 = vweird.f32 %v1234
  %vm1241 = vmor %vm1239, %vm1240
  %v1242 = vsel %vm1241, %v1234, %v1238
  %v1243 = vand.u32 2147483647, %v1233
  %vm1244 = vcmp.eq.f32.partialorder %v1243, 8.507059e+37
  %v1245 = vand.u32 %v1233, 2147483648
  %v1246 = vor.u32 1.1754944e-38, %v1245
  %v1247 = vsel %vm1244, %v1246, %v1242
  %v1248 = vmul.f32 1.0, %v1247
  %v1249 = vtanh.pop %v1229
  %v1251 = vrot.slane %v1189, 6
  %v1253 = vmul.f32 %v1248, %v1251
  %1255 = vrot.lane.b32.xlu0 %v1249, 64
  %v1256 = vpop.permute.xlu0 %1255
  %v1258 = vmul.f32 %v1248, %v1256
  %1260 = vrot.lane.b32.xlu0 %v1258, 32
  %v1261 = vpop.permute.xlu0 %1260
  %v1263 = vadd.f32 %v1253, %v1261
  %v1264 = vtanh.pop %v1263
  %1266 = vrot.lane.b32.xlu0 %v1264, 64
  %v1267 = vpop.permute.xlu0 %1266
  %v1269 = vmul.f32 %v1248, %v1267
  %1271 = vrot.lane.b32.xlu0 %v1269, 32
  %v1272 = vpop.permute.xlu0 %1271
  %1274 = vst.msk [vmem:[#allocation2 + $0x8] sm:$0xc0] %vm368, %v1272
  %v1275 = vld [vmem:[#allocation2] sm:$0xff]
  %v1276 = vld [vmem:[#allocation2 + $0x8] sm:$0xff]
  %v1277 = vld [vmem:[%s7] sm:$0xff]
  %v1278 = vld [vmem:[%s7 + $0x8] sm:$0xff]
  %v1279 = vld [vmem:[%s7 + $0x10] sm:$0xff]
  %v1280 = vld [vmem:[%s7 + $0x18] sm:$0xff]
  %v1281 = vld [vmem:[%s8] sm:$0x1]
  %v1283 = vperm.slane %v1281, 0
  %v1286 = vsel %vm80, %v1275, 0
  %v1289 = vsel %vm80, %v1276, 0
  %1291 = vmatpush.msra.mxu0 0.0
  %1292 = vmatpush.msra.mxu0 0.0
  %1293 = vmatpush.msra.mxu0 0.0
  %1294 = vmatpush.msra.mxu0 0.0
  %1295 = vmatpush.msra.mxu0 0.0
  %1296 = vmatpush.msra.mxu0 0.0
  %1297 = vmatpush.msra.mxu0 0.0
  %1298 = vmatpush.msra.mxu0 0.0
  %1299 = vmatpush.msra.mxu0 0.0
  %1300 = vmatpush.msra.mxu0 0.0
  %1301 = vmatpush.msra.mxu0 0.0
  %1302 = vmatpush.msra.mxu0 0.0
  %1303 = vmatpush.msra.mxu0 %v1280
  %1304 = vmatpush.msra.mxu0 %v1279
  %1305 = vmatpush.msra.mxu0 %v1278
  %1306 = vmatpush.msra.mxu0 %v1277
  %1307 = vmatmul.f32.gmra.mxu0 %v1286
  %v1308 = vpop.f32.mrf.mxu0
  %v1309 = vadd.f32 %v1283, %v1308
  %1310 = vmatmul.f32.gmra.mxu0 %v1289
  %v1311 = vpop.f32.mrf.mxu0
  %v1312 = vadd.f32 %v1283, %v1311
  %1313 = vdwg.mxu0
  %v1314 = vmax.f32 %v1309, 0.0
  %v1315 = vmax.f32 %v1312, 0.0
  %v1316 = vld [vmem:[%s9] sm:$0xff]
  %v1317 = vld [vmem:[%s9 + $0x8] sm:$0xff]
  %v1318 = vld [vmem:[%s9 + $0x10] sm:$0xff]
  %v1319 = vld [vmem:[%s9 + $0x18] sm:$0xff]
  %v1320 = vld [vmem:[%s9 + $0x20] sm:$0xff]
  %v1321 = vld [vmem:[%s9 + $0x28] sm:$0xff]
  %v1322 = vld [vmem:[%s9 + $0x30] sm:$0xff]
  %v1323 = vld [vmem:[%s9 + $0x38] sm:$0xff]
  %v1324 = vld [vmem:[%s9 + $0x40] sm:$0xff]
  %v1325 = vld [vmem:[%s9 + $0x48] sm:$0xff]
  %v1326 = vld [vmem:[%s9 + $0x50] sm:$0xff]
  %v1327 = vld [vmem:[%s9 + $0x58] sm:$0xff]
  %v1328 = vld [vmem:[%s9 + $0x60] sm:$0xff]
  %v1329 = vld [vmem:[%s9 + $0x68] sm:$0xff]
  %v1330 = vld [vmem:[%s9 + $0x70] sm:$0xff]
  %v1331 = vld [vmem:[%s9 + $0x78] sm:$0xff]
  %v1332 = vld [vmem:[%s10] sm:$0x1]
  %v1334 = vperm.slane %v1332, 0
  %1336 = vmatpush.msra.mxu0 %v1331
  %1337 = vmatpush.msra.mxu0 %v1330
  %1338 = vmatpush.msra.mxu0 %v1329
  %1339 = vmatpush.msra.mxu0 %v1328
  %1340 = vmatpush.msra.mxu0 %v1327
  %1341 = vmatpush.msra.mxu0 %v1326
  %1342 = vmatpush.msra.mxu0 %v1325
  %1343 = vmatpush.msra.mxu0 %v1324
  %1344 = vmatpush.msra.mxu0 %v1323
  %1345 = vmatpush.msra.mxu0 %v1322
  %1346 = vmatpush.msra.mxu0 %v1321
  %1347 = vmatpush.msra.mxu0 %v1320
  %1348 = vmatpush.msra.mxu0 %v1319
  %1349 = vmatpush.msra.mxu0 %v1318
  %1350 = vmatpush.msra.mxu0 %v1317
  %1351 = vmatpush.msra.mxu0 %v1316
  %1352 = vmatmul.f32.gmra.mxu0 %v1314
  %v1353 = vpop.f32.mrf.mxu0
  %v1354 = vadd.f32 %v1334, %v1353
  %1355 = vmatmul.f32.gmra.mxu0 %v1315
  %v1356 = vpop.f32.mrf.mxu0
  %v1357 = vadd.f32 %v1334, %v1356
  %1358 = vdwg.mxu0
  %1359 = vst [vmem:[%s11] sm:$0xff] %v1354
  %1360 = vst [vmem:[%s11 + $0x8] sm:$0xff] %v1357
  // Predicated region
  $region46: #{lstm_net_forward.1} parent=0 // pred_check
    _
  $region47: #{lstm_net_forward.1} parent=0 // pred_check_branch
    %1362 = sbr.rel (0) target = $region49
  $region48: #{lstm_net_forward.1} parent=0 // pred_region
    _
  $region49: #{lstm_net_forward.1} parent=0 // pred_fallthru
    _
  // Predicated region
  $region50: #{lstm_net_forward.1} parent=0 // pred_check
    _
  $region51: #{lstm_net_forward.1} parent=0 // pred_check_branch
    %1364 = sbr.rel (0) target = $region53
  $region52: #{lstm_net_forward.1} parent=0 // pred_region
    _
  $region53: #{lstm_net_forward.1} parent=0 // pred_fallthru
    _

</llo_original>
